<compile_context>
chip_gen: v6e
topology: v6e:2x2x1
jax: 0.10.0
libtpu: 0.0.40
codegen_flags: <defaults>
</compile_context>

<pallas_src>
import jax
import jax.numpy as jnp
from jax.experimental import pallas as pl
from jax.experimental.pallas import tpu as pltpu


def senet_kernel(x_ref, w_sq_ref, b_sq_ref, w_ex_ref, b_ex_ref,
                 pool_ref, expand_ref, o_ref):
    """One grid step: gate a (B_blk, C, L) block of x (L = T*V, lane-dense)."""
    w_sq = w_sq_ref[...]          # (R, C)
    b_sq = b_sq_ref[...]          # (R, 1)
    w_ex = w_ex_ref[...]          # (C, R)
    b_ex = b_ex_ref[...]          # (C, 1)
    pool_mat = pool_ref[...]      # (L, T)  entries 1/V  -> mean over V as matmul
    expand_mat = expand_ref[...]  # (T, L)  0/1 selector -> broadcast gate over V

    # Compute is negligible (memory-bound kernel); use full-precision f32
    # matmuls so the result matches the exact-mean reference to ~1e-7.
    hi = jax.lax.Precision.HIGHEST

    b_blk = x_ref.shape[0]
    for b in range(b_blk):        # static unroll over batch elements in block
        xb = x_ref[b].astype(jnp.float32)                       # (C, L)

        # AdaptiveAvgPool2d((None, 1)) == mean over V, done on the MXU
        # (K = L, full contraction; keeps the XLU free).
        pooled = jnp.dot(xb, pool_mat, precision=hi,
                         preferred_element_type=jnp.float32)     # (C, T)

        # action_p2_squeeze (1x1 conv) -> ReLU
        h = jnp.dot(w_sq, pooled, precision=hi,
                    preferred_element_type=jnp.float32) + b_sq   # (R, T)
        h = jnp.maximum(h, 0.0)

        # action_p2_expand (1x1 conv) -> sigmoid
        g = jnp.dot(w_ex, h, precision=hi,
                    preferred_element_type=jnp.float32) + b_ex   # (C, T)
        gate = jax.nn.sigmoid(g)                                 # (C, T)

        # Broadcast gate over the V lanes of each t via a 0/1 selector matmul,
        # keeping the big slab lane-dense (no XLU relayout on (C, L)).
        gate_l = jnp.dot(gate, expand_mat, precision=hi,
                         preferred_element_type=jnp.float32)     # (C, L)

        # x * gate + x : straight VPU multiply-add, full-lane unmasked store.
        o_ref[b] = (xb * (1.0 + gate_l)).astype(o_ref.dtype)


def _choose_block_batch(n, c, l, itemsize,
                        vmem_budget_bytes=16 * 1024 * 1024,
                        max_block_batch=16):
    """Pick how many batch elements to process per grid step."""
    # Input block + output block, each double-buffered by the pipeline: ~4x.
    per_b = 4 * c * l * itemsize
    b = int(max(1, min(vmem_budget_bytes // per_b, max_block_batch)))
    # Keep >= 2 grid steps when possible (v7x has two TensorCores).
    if n >= 2:
        b = min(b, max(1, n // 2))
    else:
        b = 1
    while n % b != 0:             # block must evenly divide the batch
        b -= 1
    return b


def senet_forward(x, w_sq, b_sq, w_ex, b_ex, *, block_batch=None):
    n, c, t, v = x.shape
    r = w_sq.shape[0]
    l = t * v

    # Lane-dense layout: flatten (T, V) -> L = T*V (free, contiguous dims).
    x_flat = x.reshape(n, c, l)

    # Resident helper matrices: mean-over-V and broadcast-over-V as matmuls.
    eye_t = jnp.eye(t, dtype=jnp.float32)
    pool_mat = jnp.repeat(eye_t, v, axis=0) * (1.0 / v)   # (L, T)
    expand_mat = jnp.repeat(eye_t, v, axis=1)             # (T, L)

    if block_batch is None:
        block_batch = _choose_block_batch(n, c, l, x.dtype.itemsize)
    assert n % block_batch == 0
    grid = (n // block_batch,)

    out_flat = pl.pallas_call(
        senet_kernel,
        out_shape=jax.ShapeDtypeStruct((n, c, l), x.dtype),
        grid_spec=pltpu.PrefetchScalarGridSpec(
            num_scalar_prefetch=0,
            grid=grid,
            in_specs=[
                pl.BlockSpec((block_batch, c, l), lambda i: (i, 0, 0)),
                # Constant index maps -> these stay VMEM-resident across grid
                # steps (no per-step re-DMA of the tiny weights/helpers).
                pl.BlockSpec((r, c), lambda i: (0, 0)),
                pl.BlockSpec((r, 1), lambda i: (0, 0)),
                pl.BlockSpec((c, r), lambda i: (0, 0)),
                pl.BlockSpec((c, 1), lambda i: (0, 0)),
                pl.BlockSpec((l, t), lambda i: (0, 0)),
                pl.BlockSpec((t, l), lambda i: (0, 0)),
            ],
            out_specs=pl.BlockSpec((block_batch, c, l), lambda i: (i, 0, 0)),
        ),
        compiler_params=pltpu.CompilerParams(
            dimension_semantics=("parallel",)),
    )(x_flat, w_sq, b_sq, w_ex, b_ex, pool_mat, expand_mat)

    return out_flat.reshape(n, c, t, v)


def senet_reference(x, w_sq, b_sq, w_ex, b_ex):
    # Pure-JAX reference of the PyTorch forward.
    hi = jax.lax.Precision.HIGHEST
    xf = x.astype(jnp.float32)
    pooled = jnp.mean(xf, axis=-1)                                      # (N, C, T)
    h = jnp.einsum("rc,nct->nrt", w_sq, pooled, precision=hi) + b_sq[None]
    h = jnp.maximum(h, 0.0)
    g = jnp.einsum("cr,nrt->nct", w_ex, h, precision=hi) + b_ex[None]
    gate = jax.nn.sigmoid(g)
    return (xf * (1.0 + gate)[..., None]).astype(x.dtype)


if __name__ == "__main__":
    # SEnet(in_channels=32, sq_scale=16, n_segment=4) -> reduced_channels = 2
    N, C, T, V = 2, 32, 8, 16          # T*V = 128 -> exactly lane-dense
    R = C // 16

    key = jax.random.PRNGKey(0)
    k_x, k_w1, k_b1, k_w2, k_b2 = jax.random.split(key, 5)

    x = jax.random.normal(k_x, (N, C, T, V), dtype=jnp.float32)
    # 1x1 conv weights (out, in); biases as column vectors for broadcast.
    w_sq = jax.random.normal(k_w1, (R, C), dtype=jnp.float32) * 0.1
    b_sq = jax.random.normal(k_b1, (R, 1), dtype=jnp.float32) * 0.1
    w_ex = jax.random.normal(k_w2, (C, R), dtype=jnp.float32) * 0.1
    b_ex = jax.random.normal(k_b2, (C, 1), dtype=jnp.float32) * 0.1

    out = senet_forward(x, w_sq, b_sq, w_ex, b_ex)
    out = jax.block_until_ready(out)

    ref = senet_reference(x, w_sq, b_sq, w_ex, b_ex)
    assert out.shape == (N, C, T, V)
    assert jnp.allclose(out, ref, atol=1e-5, rtol=1e-5), "mismatch vs reference"

    print("KERNEL_OK")
</pallas_src>

<mosaic_0001>
module attributes {stable_mosaic.version = 11 : i64} {
  func.func @senet_kernel(%arg0: i32, %arg1: memref<1x32x128xf32, #tpu.memory_space<vmem>>, %arg2: memref<2x32xf32, #tpu.memory_space<vmem>>, %arg3: memref<2x1xf32, #tpu.memory_space<vmem>>, %arg4: memref<32x2xf32, #tpu.memory_space<vmem>>, %arg5: memref<32x1xf32, #tpu.memory_space<vmem>>, %arg6: memref<128x8xf32, #tpu.memory_space<vmem>>, %arg7: memref<8x128xf32, #tpu.memory_space<vmem>>, %arg8: memref<1x32x128xf32, #tpu.memory_space<vmem>>) attributes {dimension_semantics = [#tpu.dimension_semantics<parallel>], iteration_bounds = array<i64: 2>, scalar_prefetch = 0 : i64, scratch_operands = 0 : i64, tpu.core_type = #tpu.core_type<tc>, window_params = [{transform_indices = @transform_0, window_bounds = array<i64: 1, 32, 128>}, {pipeline_mode = #tpu.pipeline_mode<synchronous>, transform_indices = @transform_1, window_bounds = array<i64: 2, 32>}, {pipeline_mode = #tpu.pipeline_mode<synchronous>, transform_indices = @transform_2, window_bounds = array<i64: 2, 1>}, {pipeline_mode = #tpu.pipeline_mode<synchronous>, transform_indices = @transform_3, window_bounds = array<i64: 32, 2>}, {pipeline_mode = #tpu.pipeline_mode<synchronous>, transform_indices = @transform_4, window_bounds = array<i64: 32, 1>}, {pipeline_mode = #tpu.pipeline_mode<synchronous>, transform_indices = @transform_5, window_bounds = array<i64: 128, 8>}, {pipeline_mode = #tpu.pipeline_mode<synchronous>, transform_indices = @transform_6, window_bounds = array<i64: 8, 128>}, {transform_indices = @transform_7, window_bounds = array<i64: 1, 32, 128>}]} {
    %c0 = arith.constant 0 : index
    %c0_0 = arith.constant 0 : index
    %0 = vector.load %arg2[%c0, %c0_0] : memref<2x32xf32, #tpu.memory_space<vmem>>, vector<2x32xf32>
    %c0_1 = arith.constant 0 : index
    %c0_2 = arith.constant 0 : index
    %1 = vector.load %arg3[%c0_1, %c0_2] : memref<2x1xf32, #tpu.memory_space<vmem>>, vector<2x1xf32>
    %c0_3 = arith.constant 0 : index
    %c0_4 = arith.constant 0 : index
    %2 = vector.load %arg4[%c0_3, %c0_4] : memref<32x2xf32, #tpu.memory_space<vmem>>, vector<32x2xf32>
    %c0_5 = arith.constant 0 : index
    %c0_6 = arith.constant 0 : index
    %3 = vector.load %arg5[%c0_5, %c0_6] : memref<32x1xf32, #tpu.memory_space<vmem>>, vector<32x1xf32>
    %c0_7 = arith.constant 0 : index
    %c0_8 = arith.constant 0 : index
    %4 = vector.load %arg6[%c0_7, %c0_8] : memref<128x8xf32, #tpu.memory_space<vmem>>, vector<128x8xf32>
    %c0_9 = arith.constant 0 : index
    %c0_10 = arith.constant 0 : index
    %5 = vector.load %arg7[%c0_9, %c0_10] : memref<8x128xf32, #tpu.memory_space<vmem>>, vector<8x128xf32>
    %c0_11 = arith.constant 0 : index
    %c0_12 = arith.constant 0 : index
    %c0_13 = arith.constant 0 : index
    %6 = vector.load %arg1[%c0_11, %c0_12, %c0_13] : memref<1x32x128xf32, #tpu.memory_space<vmem>>, vector<1x32x128xf32>
    %7 = vector.shape_cast %6 : vector<1x32x128xf32> to vector<32x128xf32>
    %cst = arith.constant dense<0.000000e+00> : vector<32x8xf32>
    %8 = tpu.matmul %7, %4, %cst {dimension_numbers = #tpu.dot_dimension_numbers<[1], [0], [0], [1], [0, 0, 1, 1], [], []>, precision = #tpu.contract_precision<fp32>} : vector<32x128xf32>, vector<128x8xf32>, vector<32x8xf32> -> vector<32x8xf32>
    %cst_14 = arith.constant dense<0.000000e+00> : vector<2x8xf32>
    %9 = tpu.matmul %0, %8, %cst_14 {dimension_numbers = #tpu.dot_dimension_numbers<[1], [0], [0], [1], [0, 0, 1, 1], [], []>, precision = #tpu.contract_precision<fp32>} : vector<2x32xf32>, vector<32x8xf32>, vector<2x8xf32> -> vector<2x8xf32>
    %10 = vector.broadcast %1 : vector<2x1xf32> to vector<2x8xf32>
    %11 = arith.addf %9, %10 : vector<2x8xf32>
    %cst_15 = arith.constant 0.000000e+00 : f32
    %12 = vector.broadcast %cst_15 : f32 to vector<2x8xf32>
    %13 = arith.maximumf %11, %12 : vector<2x8xf32>
    %cst_16 = arith.constant dense<0.000000e+00> : vector<32x8xf32>
    %14 = tpu.matmul %2, %13, %cst_16 {dimension_numbers = #tpu.dot_dimension_numbers<[1], [0], [0], [1], [0, 0, 1, 1], [], []>, precision = #tpu.contract_precision<fp32>} : vector<32x2xf32>, vector<2x8xf32>, vector<32x8xf32> -> vector<32x8xf32>
    %15 = vector.broadcast %3 : vector<32x1xf32> to vector<32x8xf32>
    %16 = arith.addf %14, %15 : vector<32x8xf32>
    %17 = arith.negf %16 : vector<32x8xf32>
    %18 = math.exp %17 : vector<32x8xf32>
    %cst_17 = arith.constant 1.000000e+00 : f32
    %19 = vector.broadcast %cst_17 : f32 to vector<32x8xf32>
    %20 = arith.addf %19, %18 : vector<32x8xf32>
    %21 = arith.divf %19, %20 : vector<32x8xf32>
    %cst_18 = arith.constant dense<0.000000e+00> : vector<32x128xf32>
    %22 = tpu.matmul %21, %5, %cst_18 {dimension_numbers = #tpu.dot_dimension_numbers<[1], [0], [0], [1], [0, 0, 1, 1], [], []>, precision = #tpu.contract_precision<fp32>} : vector<32x8xf32>, vector<8x128xf32>, vector<32x128xf32> -> vector<32x128xf32>
    %cst_19 = arith.constant 1.000000e+00 : f32
    %23 = vector.broadcast %cst_19 : f32 to vector<32x128xf32>
    %24 = arith.addf %23, %22 : vector<32x128xf32>
    %25 = arith.mulf %7, %24 : vector<32x128xf32>
    %c0_20 = arith.constant 0 : index
    %c0_21 = arith.constant 0 : index
    %c0_22 = arith.constant 0 : index
    %26 = vector.load %arg8[%c0_20, %c0_21, %c0_22] : memref<1x32x128xf32, #tpu.memory_space<vmem>>, vector<1x32x128xf32>
    %27 = vector.shape_cast %26 : vector<1x32x128xf32> to vector<32x128xf32>
    %28 = vector.shape_cast %25 : vector<32x128xf32> to vector<1x32x128xf32>
    tpu.vector_store %arg8[%c0_20, %c0_21, %c0_22], %28 {strides = array<i32>} : memref<1x32x128xf32, #tpu.memory_space<vmem>>, vector<1x32x128xf32>,
    return
  }
  func.func @transform_0(%arg0: i32) -> (i32, i32, i32) {
    %c0_i32 = arith.constant 0 : i32
    %c0_i32_0 = arith.constant 0 : i32
    %c0_i32_1 = arith.constant 0 : i32
    return %arg0, %c0_i32, %c0_i32_0 : i32, i32, i32
  }
  func.func @transform_1(%arg0: i32) -> (i32, i32) {
    %c0_i32 = arith.constant 0 : i32
    %c0_i32_0 = arith.constant 0 : i32
    %c0_i32_1 = arith.constant 0 : i32
    return %c0_i32, %c0_i32_0 : i32, i32
  }
  func.func @transform_2(%arg0: i32) -> (i32, i32) {
    %c0_i32 = arith.constant 0 : i32
    %c0_i32_0 = arith.constant 0 : i32
    %c0_i32_1 = arith.constant 0 : i32
    return %c0_i32, %c0_i32_0 : i32, i32
  }
  func.func @transform_3(%arg0: i32) -> (i32, i32) {
    %c0_i32 = arith.constant 0 : i32
    %c0_i32_0 = arith.constant 0 : i32
    %c0_i32_1 = arith.constant 0 : i32
    return %c0_i32, %c0_i32_0 : i32, i32
  }
  func.func @transform_4(%arg0: i32) -> (i32, i32) {
    %c0_i32 = arith.constant 0 : i32
    %c0_i32_0 = arith.constant 0 : i32
    %c0_i32_1 = arith.constant 0 : i32
    return %c0_i32, %c0_i32_0 : i32, i32
  }
  func.func @transform_5(%arg0: i32) -> (i32, i32) {
    %c0_i32 = arith.constant 0 : i32
    %c0_i32_0 = arith.constant 0 : i32
    %c0_i32_1 = arith.constant 0 : i32
    return %c0_i32, %c0_i32_0 : i32, i32
  }
  func.func @transform_6(%arg0: i32) -> (i32, i32) {
    %c0_i32 = arith.constant 0 : i32
    %c0_i32_0 = arith.constant 0 : i32
    %c0_i32_1 = arith.constant 0 : i32
    return %c0_i32, %c0_i32_0 : i32, i32
  }
  func.func @transform_7(%arg0: i32) -> (i32, i32, i32) {
    %c0_i32 = arith.constant 0 : i32
    %c0_i32_0 = arith.constant 0 : i32
    %c0_i32_1 = arith.constant 0 : i32
    return %arg0, %c0_i32, %c0_i32_0 : i32, i32, i32
  }
}

</mosaic_0001>

<llo_original>
// kernel: tpu_custom_call.1
$region0: #{tpu_custom_call.1}
  #allocation0 [shape = 'u32[]', space=smem, size = 0x4, offset = 0x4, fixed_abs, tag = 'smem constant byte address 0x4 - core index']
  #allocation1 [shape = 'u32[144,128]{1,0:T(1,128)}', space=vmem, size = 0x12000, scoped, tag = 'internal scratch']
  %s0 = inlined_call_operand.vmem [shape: f32[2,32,128], index: 0, kind: input, shape index: {}]
  %s1 = inlined_call_operand.vmem [shape: f32[2,32], index: 1, kind: input, shape index: {}]
  %s2 = inlined_call_operand.vmem [shape: f32[2,1], index: 2, kind: input, shape index: {}]
  %s3 = inlined_call_operand.vmem [shape: f32[32,2], index: 3, kind: input, shape index: {}]
  %s4 = inlined_call_operand.vmem [shape: f32[32,1], index: 4, kind: input, shape index: {}]
  %s5 = inlined_call_operand.vmem [shape: f32[128,8], index: 5, kind: input, shape index: {}]
  %s6 = inlined_call_operand.vmem [shape: f32[8,128], index: 6, kind: input, shape index: {}]
  %s7 = inlined_call_operand.hbm [shape: f32[2,32,128], index: 7, kind: output, shape index: {}]
  %s8 = sld [smem:[#allocation0]]
  $region61: #{tpu_custom_call.1} parent=0
    _
  %s10 = ssub.s32 1, %s8
  %s11 = scalar_select 0, %s10, %s8
  $region1: #{tpu_custom_call.1} parent=0
    #allocation2 [shape = 'u8[32768]{0}', space=vmem, size = 0x8000, scoped, tag = 'output window, operand 0']
    #allocation3 [shape = 's32[2]{0}', space=sflag, size = 0x8, scoped, tag = 'scoped memory for tpu_custom_call.1']
    %12 = vsyncpa [#allocation3], 0
    %s13 = scalar_lea.sflag [#allocation3], 1
    %14 = vsyncpa %s13, 0
    loop: start=0, step=1, limit=4
    $region2: #{tpu_custom_call.1} parent=1 // loop_pre_header
      _
    $region3: #{tpu_custom_call.1} parent=1 // loop_header
      %s16 = sphi 0, %s20
      %p17 = scmp.ge.s32.totalorder %s16, 4
      %s26 = sphi 0, %s28
      %s29 = sphi 0, %s26
      %s30 = sphi 0, %s29
      %s46 = sphi 0, %s30
      %s50 = sphi 0, %s50
      %s52 = sphi 0, %s50
      %s53 = sphi 0, %s52
      %s67 = sphi 0, %s53
      %s71 = sphi 0, %s71
      %s73 = sphi 0, %s71
      %s74 = sphi 0, %s73
      %s88 = sphi 0, %s74
      %s92 = sphi 0, %s92
      %s94 = sphi 0, %s92
      %s95 = sphi 0, %s94
      %s109 = sphi 0, %s95
      %s113 = sphi 0, %s113
      %s115 = sphi 0, %s113
      %s116 = sphi 0, %s115
      %s130 = sphi 0, %s116
      %s134 = sphi 0, %s134
      %s136 = sphi 0, %s134
      %s137 = sphi 0, %s136
      %s151 = sphi 0, %s137
      %s155 = sphi 0, %s155
      %s157 = sphi 0, %s155
      %s158 = sphi 0, %s157
      %s172 = sphi 0, %s158
      %s178 = sphi 0, %s180
      %s181 = sphi 0, %s178
      %s182 = sphi 0, %s181
      %s198 = sphi 0, %s182
    $region4: #{tpu_custom_call.1} parent=1 // loop_header_branch
      %19 = sbr.rel (%p17) target = $region8
    $region5: #{tpu_custom_call.1} parent=1 // loop_body
      %s21 = ssub.s32 %s16, 1
      %s22 = ssub.s32 %s16, 2
      %s23 = sadd.s32 %s16, 1
      %s24 = ssub.s32 %s16, %s23
      %p25 = scmp.eq.s32.totalorder %s24, 0
      %s27 = sadd.s32 %s26, 1
      %s28 = scalar_select %p25, %s26, %s27
      %p31 = pneg %p25
      %p32 = scmp.eq.s32.totalorder %s16, 1
      %p33 = por %p31, %p32
      %p34 = scmp.ne.s32.totalorder %s26, %s29
      %p35 = scmp.eq.s32.totalorder %s16, 0
      %p36 = por %p34, %p35
      %p37 = scmp.ne.s32.totalorder %s26, %s29
      %p38 = scmp.eq.s32.totalorder %s21, 1
      %p39 = por %p37, %p38
      %p40 = scmp.ne.s32.totalorder %s29, %s30
      %p41 = scmp.eq.s32.totalorder %s21, 0
      %p42 = por %p40, %p41
      %p43 = scmp.ne.s32.totalorder %s29, %s30
      %p44 = scmp.eq.s32.totalorder %s22, 1
      %p45 = por %p43, %p44
      %p47 = scmp.ne.s32.totalorder %s30, %s46
      %p48 = scmp.eq.s32.totalorder %s22, 0
      %p49 = por %p47, %p48
      %s51 = sadd.s32 %s50, 1
      %p54 = scmp.eq.s32.totalorder %s16, 1
      %p55 = scmp.ne.s32.totalorder %s50, %s52
      %p56 = scmp.eq.s32.totalorder %s16, 0
      %p57 = por %p55, %p56
      %p58 = scmp.ne.s32.totalorder %s50, %s52
      %p59 = scmp.eq.s32.totalorder %s21, 1
      %p60 = por %p58, %p59
      %p61 = scmp.ne.s32.totalorder %s52, %s53
      %p62 = scmp.eq.s32.totalorder %s21, 0
      %p63 = por %p61, %p62
      %p64 = scmp.ne.s32.totalorder %s52, %s53
      %p65 = scmp.eq.s32.totalorder %s22, 1
      %p66 = por %p64, %p65
      %p68 = scmp.ne.s32.totalorder %s53, %s67
      %p69 = scmp.eq.s32.totalorder %s22, 0
      %p70 = por %p68, %p69
      %s72 = sadd.s32 %s71, 1
      %p75 = scmp.eq.s32.totalorder %s16, 1
      %p76 = scmp.ne.s32.totalorder %s71, %s73
      %p77 = scmp.eq.s32.totalorder %s16, 0
      %p78 = por %p76, %p77
      %p79 = scmp.ne.s32.totalorder %s71, %s73
      %p80 = scmp.eq.s32.totalorder %s21, 1
      %p81 = por %p79, %p80
      %p82 = scmp.ne.s32.totalorder %s73, %s74
      %p83 = scmp.eq.s32.totalorder %s21, 0
      %p84 = por %p82, %p83
      %p85 = scmp.ne.s32.totalorder %s73, %s74
      %p86 = scmp.eq.s32.totalorder %s22, 1
      %p87 = por %p85, %p86
      %p89 = scmp.ne.s32.totalorder %s74, %s88
      %p90 = scmp.eq.s32.totalorder %s22, 0
      %p91 = por %p89, %p90
      %s93 = sadd.s32 %s92, 1
      %p96 = scmp.eq.s32.totalorder %s16, 1
      %p97 = scmp.ne.s32.totalorder %s92, %s94
      %p98 = scmp.eq.s32.totalorder %s16, 0
      %p99 = por %p97, %p98
      %p100 = scmp.ne.s32.totalorder %s92, %s94
      %p101 = scmp.eq.s32.totalorder %s21, 1
      %p102 = por %p100, %p101
      %p103 = scmp.ne.s32.totalorder %s94, %s95
      %p104 = scmp.eq.s32.totalorder %s21, 0
      %p105 = por %p103, %p104
      %p106 = scmp.ne.s32.totalorder %s94, %s95
      %p107 = scmp.eq.s32.totalorder %s22, 1
      %p108 = por %p106, %p107
      %p110 = scmp.ne.s32.totalorder %s95, %s109
      %p111 = scmp.eq.s32.totalorder %s22, 0
      %p112 = por %p110, %p111
      %s114 = sadd.s32 %s113, 1
      %p117 = scmp.eq.s32.totalorder %s16, 1
      %p118 = scmp.ne.s32.totalorder %s113, %s115
      %p119 = scmp.eq.s32.totalorder %s16, 0
      %p120 = por %p118, %p119
      %p121 = scmp.ne.s32.totalorder %s113, %s115
      %p122 = scmp.eq.s32.totalorder %s21, 1
      %p123 = por %p121, %p122
      %p124 = scmp.ne.s32.totalorder %s115, %s116
      %p125 = scmp.eq.s32.totalorder %s21, 0
      %p126 = por %p124, %p125
      %p127 = scmp.ne.s32.totalorder %s115, %s116
      %p128 = scmp.eq.s32.totalorder %s22, 1
      %p129 = por %p127, %p128
      %p131 = scmp.ne.s32.totalorder %s116, %s130
      %p132 = scmp.eq.s32.totalorder %s22, 0
      %p133 = por %p131, %p132
      %s135 = sadd.s32 %s134, 1
      %p138 = scmp.eq.s32.totalorder %s16, 1
      %p139 = scmp.ne.s32.totalorder %s134, %s136
      %p140 = scmp.eq.s32.totalorder %s16, 0
      %p141 = por %p139, %p140
      %p142 = scmp.ne.s32.totalorder %s134, %s136
      %p143 = scmp.eq.s32.totalorder %s21, 1
      %p144 = por %p142, %p143
      %p145 = scmp.ne.s32.totalorder %s136, %s137
      %p146 = scmp.eq.s32.totalorder %s21, 0
      %p147 = por %p145, %p146
      %p148 = scmp.ne.s32.totalorder %s136, %s137
      %p149 = scmp.eq.s32.totalorder %s22, 1
      %p150 = por %p148, %p149
      %p152 = scmp.ne.s32.totalorder %s137, %s151
      %p153 = scmp.eq.s32.totalorder %s22, 0
      %p154 = por %p152, %p153
      %s156 = sadd.s32 %s155, 1
      %p159 = scmp.eq.s32.totalorder %s16, 1
      %p160 = scmp.ne.s32.totalorder %s155, %s157
      %p161 = scmp.eq.s32.totalorder %s16, 0
      %p162 = por %p160, %p161
      %p163 = scmp.ne.s32.totalorder %s155, %s157
      %p164 = scmp.eq.s32.totalorder %s21, 1
      %p165 = por %p163, %p164
      %p166 = scmp.ne.s32.totalorder %s157, %s158
      %p167 = scmp.eq.s32.totalorder %s21, 0
      %p168 = por %p166, %p167
      %p169 = scmp.ne.s32.totalorder %s157, %s158
      %p170 = scmp.eq.s32.totalorder %s22, 1
      %p171 = por %p169, %p170
      %p173 = scmp.ne.s32.totalorder %s158, %s172
      %p174 = scmp.eq.s32.totalorder %s22, 0
      %p175 = por %p173, %p174
      %s176 = ssub.s32 %s16, %s23
      %p177 = scmp.eq.s32.totalorder %s176, 0
      %s179 = sadd.s32 %s178, 1
      %s180 = scalar_select %p177, %s178, %s179
      %p183 = pneg %p177
      %p184 = scmp.eq.s32.totalorder %s16, 1
      %p185 = por %p183, %p184
      %p186 = scmp.ne.s32.totalorder %s178, %s181
      %p187 = scmp.eq.s32.totalorder %s16, 0
      %p188 = por %p186, %p187
      %p189 = scmp.ne.s32.totalorder %s178, %s181
      %p190 = scmp.eq.s32.totalorder %s21, 1
      %p191 = por %p189, %p190
      %p192 = scmp.ne.s32.totalorder %s181, %s182
      %p193 = scmp.eq.s32.totalorder %s21, 0
      %p194 = por %p192, %p193
      %p195 = scmp.ne.s32.totalorder %s181, %s182
      %p196 = scmp.eq.s32.totalorder %s22, 1
      %p197 = por %p195, %p196
      %p199 = scmp.ne.s32.totalorder %s182, %s198
      %p200 = scmp.eq.s32.totalorder %s22, 0
      %p201 = por %p199, %p200
      %p202 = scmp.le.s32.totalorder 1, %s16
      %p203 = scmp.lt.s32.totalorder %s16, 3
      %p204 = pnand %p202, %p203
      %p205 = pneg %p204
      // Predicated region
      $region9: #{tpu_custom_call.1} parent=5 // pred_check
        _
      $region10: #{tpu_custom_call.1} parent=5 // pred_check_branch
        %207 = sbr.rel (%p204) target = $region12
      $region11: #{tpu_custom_call.1} parent=5 // pred_region
        %s208 = ssub.s32 %s16, 1
        // Predicated region
        $region13: #{tpu_custom_call.1} parent=11 // pred_check
          %p209 = pneg %p63
        $region14: #{tpu_custom_call.1} parent=11 // pred_check_branch
          %211 = sbr.rel (%p209) target = $region16
        $region15: #{tpu_custom_call.1} parent=11 // pred_region
          _
        $region16: #{tpu_custom_call.1} parent=11 // pred_fallthru
          _
        // Predicated region
        $region17: #{tpu_custom_call.1} parent=11 // pred_check
          %p212 = pneg %p84
        $region18: #{tpu_custom_call.1} parent=11 // pred_check_branch
          %214 = sbr.rel (%p212) target = $region20
        $region19: #{tpu_custom_call.1} parent=11 // pred_region
          _
        $region20: #{tpu_custom_call.1} parent=11 // pred_fallthru
          _
        // Predicated region
        $region21: #{tpu_custom_call.1} parent=11 // pred_check
          %p215 = pneg %p105
        $region22: #{tpu_custom_call.1} parent=11 // pred_check_branch
          %217 = sbr.rel (%p215) target = $region24
        $region23: #{tpu_custom_call.1} parent=11 // pred_region
          _
        $region24: #{tpu_custom_call.1} parent=11 // pred_fallthru
          _
        // Predicated region
        $region25: #{tpu_custom_call.1} parent=11 // pred_check
          %p218 = pneg %p126
        $region26: #{tpu_custom_call.1} parent=11 // pred_check_branch
          %220 = sbr.rel (%p218) target = $region28
        $region27: #{tpu_custom_call.1} parent=11 // pred_region
          _
        $region28: #{tpu_custom_call.1} parent=11 // pred_fallthru
          _
        // Predicated region
        $region29: #{tpu_custom_call.1} parent=11 // pred_check
          %p221 = pneg %p147
        $region30: #{tpu_custom_call.1} parent=11 // pred_check_branch
          %223 = sbr.rel (%p221) target = $region32
        $region31: #{tpu_custom_call.1} parent=11 // pred_region
          _
        $region32: #{tpu_custom_call.1} parent=11 // pred_fallthru
          _
        // Predicated region
        $region33: #{tpu_custom_call.1} parent=11 // pred_check
          %p224 = pneg %p168
        $region34: #{tpu_custom_call.1} parent=11 // pred_check_branch
          %226 = sbr.rel (%p224) target = $region36
        $region35: #{tpu_custom_call.1} parent=11 // pred_region
          _
        $region36: #{tpu_custom_call.1} parent=11 // pred_fallthru
          _
      $region12: #{tpu_custom_call.1} parent=5 // pred_fallthru
        _
      %p227 = scmp.lt.s32.totalorder %s16, 2
      // Predicated region
      $region37: #{tpu_custom_call.1} parent=5 // pred_check
        %p228 = pneg %p227
      $region38: #{tpu_custom_call.1} parent=5 // pred_check_branch
        %230 = sbr.rel (%p228) target = $region40
      $region39: #{tpu_custom_call.1} parent=5 // pred_region
        // Predicated region
        $region41: #{tpu_custom_call.1} parent=39 // pred_check
          %p231 = pneg %p36
        $region42: #{tpu_custom_call.1} parent=39 // pred_check_branch
          %233 = sbr.rel (%p231) target = $region44
        $region43: #{tpu_custom_call.1} parent=39 // pred_region
          %p234 = scmp.lt.s32.totalorder %s16, 1
          %s235 = scalar_select %p234, %s16, 1
          %s236 = smul.addr %s235, 4
          %s237 = smul.addr %s236, 8
          %s238 = scalar_lea.vmem %s0, %s237
        $region44: #{tpu_custom_call.1} parent=39 // pred_fallthru
          _
      $region40: #{tpu_custom_call.1} parent=5 // pred_fallthru
        _
      %p239 = scmp.le.s32.totalorder 1, %s16
      %p240 = scmp.lt.s32.totalorder %s16, 3
      %p241 = pnand %p239, %p240
      %p242 = pneg %p241
      // Predicated region
      $region45: #{tpu_custom_call.1} parent=5 // pred_check
        _
      $region46: #{tpu_custom_call.1} parent=5 // pred_check_branch
        %244 = sbr.rel (%p241) target = $region48
      $region47: #{tpu_custom_call.1} parent=5 // pred_region
        %s245 = ssub.s32 %s16, 1
        %p246 = scmp.lt.s32.totalorder %s21, 1
        %s247 = scalar_select %p246, %s21, 1
        %s248 = smul.addr %s247, 4
        %s249 = smul.addr %s248, 8
        %s250 = scalar_lea.vmem %s0, %s249
        %p251 = pneg %p42
        %p252 = pneg %p39
        %p253 = pneg %p63
        %p254 = pneg %p60
        %p255 = pneg %p84
        %p256 = pneg %p81
        %p257 = pneg %p105
        %p258 = pneg %p102
        %p259 = pneg %p126
        %p260 = pneg %p123
        %p261 = pneg %p147
        %p262 = pneg %p144
        %p263 = pneg %p168
        %p264 = pneg %p165
        %p265 = pneg %p194
        %p266 = pneg %p191
        %s267 = sand.u32 %s181, 1
        %s268 = scalar_lea.sflag [#allocation3], %s267
        %s269 = sand.u32 %s181, 1
        %s270 = smul.addr %s269, 32
        %s271 = scalar_lea.vmem [#allocation2], %s270
        %p272 = scmp.lt.s32.totalorder %s21, 1
        %s273 = scalar_select %p272, %s21, 1
        %s274 = smul.addr %s273, 4
        %s275 = smul.addr %s274, 8
        %s276 = scalar_lea.vmem %s0, %s275
        %v277 = vld [vmem:[%s1] sm:$0x3]
        %v278 = vld [vmem:[%s2] sm:$0x3]
        %v279 = vld [vmem:[%s3] sm:$0xff]
        %v280 = vld [vmem:[%s3 + $0x8] sm:$0xff]
        %v281 = vld [vmem:[%s3 + $0x10] sm:$0xff]
        %v282 = vld [vmem:[%s3 + $0x18] sm:$0xff]
        %v283 = vld [vmem:[%s4] sm:$0xff]
        %v284 = vld [vmem:[%s4 + $0x8] sm:$0xff]
        %v285 = vld [vmem:[%s4 + $0x10] sm:$0xff]
        %v286 = vld [vmem:[%s4 + $0x18] sm:$0xff]
        %v287 = vld [vmem:[%s5] sm:$0xff]
        %v288 = vld [vmem:[%s5 + $0x8] sm:$0xff]
        %v289 = vld [vmem:[%s5 + $0x10] sm:$0xff]
        %v290 = vld [vmem:[%s5 + $0x18] sm:$0xff]
        %v291 = vld [vmem:[%s5 + $0x20] sm:$0xff]
        %v292 = vld [vmem:[%s5 + $0x28] sm:$0xff]
        %v293 = vld [vmem:[%s5 + $0x30] sm:$0xff]
        %v294 = vld [vmem:[%s5 + $0x38] sm:$0xff]
        %v295 = vld [vmem:[%s5 + $0x40] sm:$0xff]
        %v296 = vld [vmem:[%s5 + $0x48] sm:$0xff]
        %v297 = vld [vmem:[%s5 + $0x50] sm:$0xff]
        %v298 = vld [vmem:[%s5 + $0x58] sm:$0xff]
        %v299 = vld [vmem:[%s5 + $0x60] sm:$0xff]
        %v300 = vld [vmem:[%s5 + $0x68] sm:$0xff]
        %v301 = vld [vmem:[%s5 + $0x70] sm:$0xff]
        %v302 = vld [vmem:[%s5 + $0x78] sm:$0xff]
        %v303 = vld [vmem:[%s6] sm:$0xff]
        %v304 = vld [vmem:[%s276] sm:$0xff]
        %v305 = vld [vmem:[%s276 + $0x8] sm:$0xff]
        %v306 = vld [vmem:[%s276 + $0x10] sm:$0xff]
        %v307 = vld [vmem:[%s276 + $0x18] sm:$0xff]
        %308 = vmatprep.subr.mxu0 0.0
        %v309 = vand.u32 %v302, 4294901760
        %310 = vmatpush1.msra.mxu0 %v309
        %311 = vmatprep.subr.mxu0 0.0
        %v312 = vand.u32 %v301, 4294901760
        %313 = vmatpush1.msra.mxu0 %v312
        %314 = vmatprep.subr.mxu0 0.0
        %v315 = vand.u32 %v300, 4294901760
        %316 = vmatpush1.msra.mxu0 %v315
        %317 = vmatprep.subr.mxu0 0.0
        %v318 = vand.u32 %v299, 4294901760
        %319 = vmatpush1.msra.mxu0 %v318
        %320 = vmatprep.subr.mxu0 0.0
        %v321 = vand.u32 %v298, 4294901760
        %322 = vmatpush1.msra.mxu0 %v321
        %323 = vmatprep.subr.mxu0 0.0
        %v324 = vand.u32 %v297, 4294901760
        %325 = vmatpush1.msra.mxu0 %v324
        %326 = vmatprep.subr.mxu0 0.0
        %v327 = vand.u32 %v296, 4294901760
        %328 = vmatpush1.msra.mxu0 %v327
        %329 = vmatprep.subr.mxu0 0.0
        %v330 = vand.u32 %v295, 4294901760
        %331 = vmatpush1.msra.mxu0 %v330
        %332 = vmatprep.subr.mxu0 0.0
        %v333 = vand.u32 %v294, 4294901760
        %334 = vmatpush1.msra.mxu0 %v333
        %335 = vmatprep.subr.mxu0 0.0
        %v336 = vand.u32 %v293, 4294901760
        %337 = vmatpush1.msra.mxu0 %v336
        %338 = vmatprep.subr.mxu0 0.0
        %v339 = vand.u32 %v292, 4294901760
        %340 = vmatpush1.msra.mxu0 %v339
        %341 = vmatprep.subr.mxu0 0.0
        %v342 = vand.u32 %v291, 4294901760
        %343 = vmatpush1.msra.mxu0 %v342
        %344 = vmatprep.subr.mxu0 0.0
        %v345 = vand.u32 %v290, 4294901760
        %346 = vmatpush1.msra.mxu0 %v345
        %347 = vmatprep.subr.mxu0 0.0
        %v348 = vand.u32 %v289, 4294901760
        %349 = vmatpush1.msra.mxu0 %v348
        %350 = vmatprep.subr.mxu0 0.0
        %v351 = vand.u32 %v288, 4294901760
        %352 = vmatpush1.msra.mxu0 %v351
        %353 = vmatprep.subr.mxu0 0.0
        %v354 = vand.u32 %v287, 4294901760
        %355 = vmatpush1.msra.mxu0 %v354
        %356 = vmatprep.subr.mxu0 0.0
        %357 = vmatpush2.msra.mxu0 0.0
        %358 = vmatprep.subr.mxu0 0.0
        %359 = vmatpush2.msra.mxu0 0.0
        %360 = vmatprep.subr.mxu0 0.0
        %361 = vmatpush2.msra.mxu0 0.0
        %362 = vmatprep.subr.mxu0 0.0
        %363 = vmatpush2.msra.mxu0 0.0
        %364 = vmatprep.subr.mxu0 0.0
        %365 = vmatpush2.msra.mxu0 0.0
        %366 = vmatprep.subr.mxu0 0.0
        %367 = vmatpush2.msra.mxu0 0.0
        %368 = vmatprep.subr.mxu0 0.0
        %369 = vmatpush2.msra.mxu0 0.0
        %370 = vmatprep.subr.mxu0 0.0
        %371 = vmatpush2.msra.mxu0 0.0
        %372 = vmatprep.subr.mxu0 0.0
        %373 = vmatpush2.msra.mxu0 0.0
        %374 = vmatprep.subr.mxu0 0.0
        %375 = vmatpush2.msra.mxu0 0.0
        %376 = vmatprep.subr.mxu0 0.0
        %377 = vmatpush2.msra.mxu0 0.0
        %378 = vmatprep.subr.mxu0 0.0
        %379 = vmatpush2.msra.mxu0 0.0
        %380 = vmatprep.subr.mxu0 0.0
        %381 = vmatpush2.msra.mxu0 0.0
        %382 = vmatprep.subr.mxu0 0.0
        %383 = vmatpush2.msra.mxu0 0.0
        %384 = vmatprep.subr.mxu0 0.0
        %385 = vmatpush2.msra.mxu0 0.0
        %386 = vmatprep.subr.mxu0 0.0
        %387 = vmatpush2.msra.mxu0 0.0
        %388 = vmatprep.mubr.f32.mxu0 0.0
        %v389 = vand.u32 %v304, 4294901760
        %v390 = vsub.f32 %v304, %v389
        %v391 = vand.u32 %v390, 4294901760
        %v392 = vsub.f32 %v390, %v391
        %v393 = vand.u32 %v392, 4294901760
        %394 = vmatmul.mubr.f32.gmra.mxu0 %v393
        %v395 = vpop.f32.mrf.mxu0
        %v396 = vadd.f32 0.0, %v395
        %v397 = vpop.f32.mrf.mxu0
        %398 = vmatprep.mubr.f32.mxu0 0.0
        %v399 = vand.u32 %v305, 4294901760
        %v400 = vsub.f32 %v305, %v399
        %v401 = vand.u32 %v400, 4294901760
        %v402 = vsub.f32 %v400, %v401
        %v403 = vand.u32 %v402, 4294901760
        %404 = vmatmul.mubr.f32.gmra.mxu0 %v403
        %v405 = vpop.f32.mrf.mxu0
        %v406 = vadd.f32 0.0, %v405
        %v407 = vpop.f32.mrf.mxu0
        %408 = vmatprep.mubr.f32.mxu0 0.0
        %v409 = vand.u32 %v306, 4294901760
        %v410 = vsub.f32 %v306, %v409
        %v411 = vand.u32 %v410, 4294901760
        %v412 = vsub.f32 %v410, %v411
        %v413 = vand.u32 %v412, 4294901760
        %414 = vmatmul.mubr.f32.gmra.mxu0 %v413
        %v415 = vpop.f32.mrf.mxu0
        %v416 = vadd.f32 0.0, %v415
        %v417 = vpop.f32.mrf.mxu0
        %418 = vmatprep.mubr.f32.mxu0 0.0
        %v419 = vand.u32 %v307, 4294901760
        %v420 = vsub.f32 %v307, %v419
        %v421 = vand.u32 %v420, 4294901760
        %v422 = vsub.f32 %v420, %v421
        %v423 = vand.u32 %v422, 4294901760
        %424 = vmatmul.mubr.f32.gmra.mxu0 %v423
        %v425 = vpop.f32.mrf.mxu0
        %v426 = vadd.f32 0.0, %v425
        %v427 = vpop.f32.mrf.mxu0
        %428 = vdwg.mxu0
        %429 = vmatprep.subr.mxu0 0.0
        %v430 = vand.u32 %v302, 4294901760
        %v431 = vsub.f32 %v302, %v430
        %v432 = vand.u32 %v431, 4294901760
        %v433 = vsub.f32 %v431, %v432
        %v434 = vand.u32 %v433, 4294901760
        %435 = vmatpush1.msra.mxu0 %v434
        %436 = vmatprep.subr.mxu0 0.0
        %v437 = vand.u32 %v301, 4294901760
        %v438 = vsub.f32 %v301, %v437
        %v439 = vand.u32 %v438, 4294901760
        %v440 = vsub.f32 %v438, %v439
        %v441 = vand.u32 %v440, 4294901760
        %442 = vmatpush1.msra.mxu0 %v441
        %443 = vmatprep.subr.mxu0 0.0
        %v444 = vand.u32 %v300, 4294901760
        %v445 = vsub.f32 %v300, %v444
        %v446 = vand.u32 %v445, 4294901760
        %v447 = vsub.f32 %v445, %v446
        %v448 = vand.u32 %v447, 4294901760
        %449 = vmatpush1.msra.mxu0 %v448
        %450 = vmatprep.subr.mxu0 0.0
        %v451 = vand.u32 %v299, 4294901760
        %v452 = vsub.f32 %v299, %v451
        %v453 = vand.u32 %v452, 4294901760
        %v454 = vsub.f32 %v452, %v453
        %v455 = vand.u32 %v454, 4294901760
        %456 = vmatpush1.msra.mxu0 %v455
        %457 = vmatprep.subr.mxu0 0.0
        %v458 = vand.u32 %v298, 4294901760
        %v459 = vsub.f32 %v298, %v458
        %v460 = vand.u32 %v459, 4294901760
        %v461 = vsub.f32 %v459, %v460
        %v462 = vand.u32 %v461, 4294901760
        %463 = vmatpush1.msra.mxu0 %v462
        %464 = vmatprep.subr.mxu0 0.0
        %v465 = vand.u32 %v297, 4294901760
        %v466 = vsub.f32 %v297, %v465
        %v467 = vand.u32 %v466, 4294901760
        %v468 = vsub.f32 %v466, %v467
        %v469 = vand.u32 %v468, 4294901760
        %470 = vmatpush1.msra.mxu0 %v469
        %471 = vmatprep.subr.mxu0 0.0
        %v472 = vand.u32 %v296, 4294901760
        %v473 = vsub.f32 %v296, %v472
        %v474 = vand.u32 %v473, 4294901760
        %v475 = vsub.f32 %v473, %v474
        %v476 = vand.u32 %v475, 4294901760
        %477 = vmatpush1.msra.mxu0 %v476
        %478 = vmatprep.subr.mxu0 0.0
        %v479 = vand.u32 %v295, 4294901760
        %v480 = vsub.f32 %v295, %v479
        %v481 = vand.u32 %v480, 4294901760
        %v482 = vsub.f32 %v480, %v481
        %v483 = vand.u32 %v482, 4294901760
        %484 = vmatpush1.msra.mxu0 %v483
        %485 = vmatprep.subr.mxu0 0.0
        %v486 = vand.u32 %v294, 4294901760
        %v487 = vsub.f32 %v294, %v486
        %v488 = vand.u32 %v487, 4294901760
        %v489 = vsub.f32 %v487, %v488
        %v490 = vand.u32 %v489, 4294901760
        %491 = vmatpush1.msra.mxu0 %v490
        %492 = vmatprep.subr.mxu0 0.0
        %v493 = vand.u32 %v293, 4294901760
        %v494 = vsub.f32 %v293, %v493
        %v495 = vand.u32 %v494, 4294901760
        %v496 = vsub.f32 %v494, %v495
        %v497 = vand.u32 %v496, 4294901760
        %498 = vmatpush1.msra.mxu0 %v497
        %499 = vmatprep.subr.mxu0 0.0
        %v500 = vand.u32 %v292, 4294901760
        %v501 = vsub.f32 %v292, %v500
        %v502 = vand.u32 %v501, 4294901760
        %v503 = vsub.f32 %v501, %v502
        %v504 = vand.u32 %v503, 4294901760
        %505 = vmatpush1.msra.mxu0 %v504
        %506 = vmatprep.subr.mxu0 0.0
        %v507 = vand.u32 %v291, 4294901760
        %v508 = vsub.f32 %v291, %v507
        %v509 = vand.u32 %v508, 4294901760
        %v510 = vsub.f32 %v508, %v509
        %v511 = vand.u32 %v510, 4294901760
        %512 = vmatpush1.msra.mxu0 %v511
        %513 = vmatprep.subr.mxu0 0.0
        %v514 = vand.u32 %v290, 4294901760
        %v515 = vsub.f32 %v290, %v514
        %v516 = vand.u32 %v515, 4294901760
        %v517 = vsub.f32 %v515, %v516
        %v518 = vand.u32 %v517, 4294901760
        %519 = vmatpush1.msra.mxu0 %v518
        %520 = vmatprep.subr.mxu0 0.0
        %v521 = vand.u32 %v289, 4294901760
        %v522 = vsub.f32 %v289, %v521
        %v523 = vand.u32 %v522, 4294901760
        %v524 = vsub.f32 %v522, %v523
        %v525 = vand.u32 %v524, 4294901760
        %526 = vmatpush1.msra.mxu0 %v525
        %527 = vmatprep.subr.mxu0 0.0
        %v528 = vand.u32 %v288, 4294901760
        %v529 = vsub.f32 %v288, %v528
        %v530 = vand.u32 %v529, 4294901760
        %v531 = vsub.f32 %v529, %v530
        %v532 = vand.u32 %v531, 4294901760
        %533 = vmatpush1.msra.mxu0 %v532
        %534 = vmatprep.subr.mxu0 0.0
        %v535 = vand.u32 %v287, 4294901760
        %v536 = vsub.f32 %v287, %v535
        %v537 = vand.u32 %v536, 4294901760
        %v538 = vsub.f32 %v536, %v537
        %v539 = vand.u32 %v538, 4294901760
        %540 = vmatpush1.msra.mxu0 %v539
        %541 = vmatprep.subr.mxu0 0.0
        %542 = vmatpush2.msra.mxu0 0.0
        %543 = vmatprep.subr.mxu0 0.0
        %544 = vmatpush2.msra.mxu0 0.0
        %545 = vmatprep.subr.mxu0 0.0
        %546 = vmatpush2.msra.mxu0 0.0
        %547 = vmatprep.subr.mxu0 0.0
        %548 = vmatpush2.msra.mxu0 0.0
        %549 = vmatprep.subr.mxu0 0.0
        %550 = vmatpush2.msra.mxu0 0.0
        %551 = vmatprep.subr.mxu0 0.0
        %552 = vmatpush2.msra.mxu0 0.0
        %553 = vmatprep.subr.mxu0 0.0
        %554 = vmatpush2.msra.mxu0 0.0
        %555 = vmatprep.subr.mxu0 0.0
        %556 = vmatpush2.msra.mxu0 0.0
        %557 = vmatprep.subr.mxu0 0.0
        %558 = vmatpush2.msra.mxu0 0.0
        %559 = vmatprep.subr.mxu0 0.0
        %560 = vmatpush2.msra.mxu0 0.0
        %561 = vmatprep.subr.mxu0 0.0
        %562 = vmatpush2.msra.mxu0 0.0
        %563 = vmatprep.subr.mxu0 0.0
        %564 = vmatpush2.msra.mxu0 0.0
        %565 = vmatprep.subr.mxu0 0.0
        %566 = vmatpush2.msra.mxu0 0.0
        %567 = vmatprep.subr.mxu0 0.0
        %568 = vmatpush2.msra.mxu0 0.0
        %569 = vmatprep.subr.mxu0 0.0
        %570 = vmatpush2.msra.mxu0 0.0
        %571 = vmatprep.subr.mxu0 0.0
        %572 = vmatpush2.msra.mxu0 0.0
        %573 = vmatprep.mubr.f32.mxu0 0.0
        %v574 = vand.u32 %v304, 4294901760
        %575 = vmatmul.mubr.f32.gmra.mxu0 %v574
        %v576 = vpop.f32.mrf.mxu0
        %v577 = vadd.f32 %v396, %v576
        %v578 = vpop.f32.mrf.mxu0
        %579 = vmatprep.mubr.f32.mxu0 0.0
        %v580 = vand.u32 %v305, 4294901760
        %581 = vmatmul.mubr.f32.gmra.mxu0 %v580
        %v582 = vpop.f32.mrf.mxu0
        %v583 = vadd.f32 %v406, %v582
        %v584 = vpop.f32.mrf.mxu0
        %585 = vmatprep.mubr.f32.mxu0 0.0
        %v586 = vand.u32 %v306, 4294901760
        %587 = vmatmul.mubr.f32.gmra.mxu0 %v586
        %v588 = vpop.f32.mrf.mxu0
        %v589 = vadd.f32 %v416, %v588
        %v590 = vpop.f32.mrf.mxu0
        %591 = vmatprep.mubr.f32.mxu0 0.0
        %v592 = vand.u32 %v307, 4294901760
        %593 = vmatmul.mubr.f32.gmra.mxu0 %v592
        %v594 = vpop.f32.mrf.mxu0
        %v595 = vadd.f32 %v426, %v594
        %v596 = vpop.f32.mrf.mxu0
        %597 = vdwg.mxu0
        %598 = vmatprep.subr.mxu0 0.0
        %v599 = vand.u32 %v302, 4294901760
        %v600 = vsub.f32 %v302, %v599
        %601 = vmatpush1.msra.mxu0 %v600
        %602 = vmatprep.subr.mxu0 0.0
        %v603 = vand.u32 %v301, 4294901760
        %v604 = vsub.f32 %v301, %v603
        %605 = vmatpush1.msra.mxu0 %v604
        %606 = vmatprep.subr.mxu0 0.0
        %v607 = vand.u32 %v300, 4294901760
        %v608 = vsub.f32 %v300, %v607
        %609 = vmatpush1.msra.mxu0 %v608
        %610 = vmatprep.subr.mxu0 0.0
        %v611 = vand.u32 %v299, 4294901760
        %v612 = vsub.f32 %v299, %v611
        %613 = vmatpush1.msra.mxu0 %v612
        %614 = vmatprep.subr.mxu0 0.0
        %v615 = vand.u32 %v298, 4294901760
        %v616 = vsub.f32 %v298, %v615
        %617 = vmatpush1.msra.mxu0 %v616
        %618 = vmatprep.subr.mxu0 0.0
        %v619 = vand.u32 %v297, 4294901760
        %v620 = vsub.f32 %v297, %v619
        %621 = vmatpush1.msra.mxu0 %v620
        %622 = vmatprep.subr.mxu0 0.0
        %v623 = vand.u32 %v296, 4294901760
        %v624 = vsub.f32 %v296, %v623
        %625 = vmatpush1.msra.mxu0 %v624
        %626 = vmatprep.subr.mxu0 0.0
        %v627 = vand.u32 %v295, 4294901760
        %v628 = vsub.f32 %v295, %v627
        %629 = vmatpush1.msra.mxu0 %v628
        %630 = vmatprep.subr.mxu0 0.0
        %v631 = vand.u32 %v294, 4294901760
        %v632 = vsub.f32 %v294, %v631
        %633 = vmatpush1.msra.mxu0 %v632
        %634 = vmatprep.subr.mxu0 0.0
        %v635 = vand.u32 %v293, 4294901760
        %v636 = vsub.f32 %v293, %v635
        %637 = vmatpush1.msra.mxu0 %v636
        %638 = vmatprep.subr.mxu0 0.0
        %v639 = vand.u32 %v292, 4294901760
        %v640 = vsub.f32 %v292, %v639
        %641 = vmatpush1.msra.mxu0 %v640
        %642 = vmatprep.subr.mxu0 0.0
        %v643 = vand.u32 %v291, 4294901760
        %v644 = vsub.f32 %v291, %v643
        %645 = vmatpush1.msra.mxu0 %v644
        %646 = vmatprep.subr.mxu0 0.0
        %v647 = vand.u32 %v290, 4294901760
        %v648 = vsub.f32 %v290, %v647
        %649 = vmatpush1.msra.mxu0 %v648
        %650 = vmatprep.subr.mxu0 0.0
        %v651 = vand.u32 %v289, 4294901760
        %v652 = vsub.f32 %v289, %v651
        %653 = vmatpush1.msra.mxu0 %v652
        %654 = vmatprep.subr.mxu0 0.0
        %v655 = vand.u32 %v288, 4294901760
        %v656 = vsub.f32 %v288, %v655
        %657 = vmatpush1.msra.mxu0 %v656
        %658 = vmatprep.subr.mxu0 0.0
        %v659 = vand.u32 %v287, 4294901760
        %v660 = vsub.f32 %v287, %v659
        %661 = vmatpush1.msra.mxu0 %v660
        %662 = vmatprep.subr.mxu0 0.0
        %663 = vmatpush2.msra.mxu0 0.0
        %664 = vmatprep.subr.mxu0 0.0
        %665 = vmatpush2.msra.mxu0 0.0
        %666 = vmatprep.subr.mxu0 0.0
        %667 = vmatpush2.msra.mxu0 0.0
        %668 = vmatprep.subr.mxu0 0.0
        %669 = vmatpush2.msra.mxu0 0.0
        %670 = vmatprep.subr.mxu0 0.0
        %671 = vmatpush2.msra.mxu0 0.0
        %672 = vmatprep.subr.mxu0 0.0
        %673 = vmatpush2.msra.mxu0 0.0
        %674 = vmatprep.subr.mxu0 0.0
        %675 = vmatpush2.msra.mxu0 0.0
        %676 = vmatprep.subr.mxu0 0.0
        %677 = vmatpush2.msra.mxu0 0.0
        %678 = vmatprep.subr.mxu0 0.0
        %679 = vmatpush2.msra.mxu0 0.0
        %680 = vmatprep.subr.mxu0 0.0
        %681 = vmatpush2.msra.mxu0 0.0
        %682 = vmatprep.subr.mxu0 0.0
        %683 = vmatpush2.msra.mxu0 0.0
        %684 = vmatprep.subr.mxu0 0.0
        %685 = vmatpush2.msra.mxu0 0.0
        %686 = vmatprep.subr.mxu0 0.0
        %687 = vmatpush2.msra.mxu0 0.0
        %688 = vmatprep.subr.mxu0 0.0
        %689 = vmatpush2.msra.mxu0 0.0
        %690 = vmatprep.subr.mxu0 0.0
        %691 = vmatpush2.msra.mxu0 0.0
        %692 = vmatprep.subr.mxu0 0.0
        %693 = vmatpush2.msra.mxu0 0.0
        %694 = vmatprep.mubr.f32.mxu0 0.0
        %v695 = vand.u32 %v304, 4294901760
        %v696 = vsub.f32 %v304, %v695
        %697 = vmatmul.mubr.f32.gmra.mxu0 %v696
        %v698 = vpop.f32.mrf.mxu0
        %v699 = vadd.f32 %v577, %v698
        %v700 = vpop.f32.mrf.mxu0
        %701 = vmatprep.mubr.f32.mxu0 0.0
        %v702 = vand.u32 %v305, 4294901760
        %v703 = vsub.f32 %v305, %v702
        %704 = vmatmul.mubr.f32.gmra.mxu0 %v703
        %v705 = vpop.f32.mrf.mxu0
        %v706 = vadd.f32 %v583, %v705
        %v707 = vpop.f32.mrf.mxu0
        %708 = vmatprep.mubr.f32.mxu0 0.0
        %v709 = vand.u32 %v306, 4294901760
        %v710 = vsub.f32 %v306, %v709
        %711 = vmatmul.mubr.f32.gmra.mxu0 %v710
        %v712 = vpop.f32.mrf.mxu0
        %v713 = vadd.f32 %v589, %v712
        %v714 = vpop.f32.mrf.mxu0
        %715 = vmatprep.mubr.f32.mxu0 0.0
        %v716 = vand.u32 %v307, 4294901760
        %v717 = vsub.f32 %v307, %v716
        %718 = vmatmul.mubr.f32.gmra.mxu0 %v717
        %v719 = vpop.f32.mrf.mxu0
        %v720 = vadd.f32 %v595, %v719
        %v721 = vpop.f32.mrf.mxu0
        %722 = vdwg.mxu0
        %723 = vmatprep.subr.mxu0 0.0
        %v724 = vand.u32 %v302, 4294901760
        %725 = vmatpush1.msra.mxu0 %v724
        %726 = vmatprep.subr.mxu0 0.0
        %v727 = vand.u32 %v301, 4294901760
        %728 = vmatpush1.msra.mxu0 %v727
        %729 = vmatprep.subr.mxu0 0.0
        %v730 = vand.u32 %v300, 4294901760
        %731 = vmatpush1.msra.mxu0 %v730
        %732 = vmatprep.subr.mxu0 0.0
        %v733 = vand.u32 %v299, 4294901760
        %734 = vmatpush1.msra.mxu0 %v733
        %735 = vmatprep.subr.mxu0 0.0
        %v736 = vand.u32 %v298, 4294901760
        %737 = vmatpush1.msra.mxu0 %v736
        %738 = vmatprep.subr.mxu0 0.0
        %v739 = vand.u32 %v297, 4294901760
        %740 = vmatpush1.msra.mxu0 %v739
        %741 = vmatprep.subr.mxu0 0.0
        %v742 = vand.u32 %v296, 4294901760
        %743 = vmatpush1.msra.mxu0 %v742
        %744 = vmatprep.subr.mxu0 0.0
        %v745 = vand.u32 %v295, 4294901760
        %746 = vmatpush1.msra.mxu0 %v745
        %747 = vmatprep.subr.mxu0 0.0
        %v748 = vand.u32 %v294, 4294901760
        %749 = vmatpush1.msra.mxu0 %v748
        %750 = vmatprep.subr.mxu0 0.0
        %v751 = vand.u32 %v293, 4294901760
        %752 = vmatpush1.msra.mxu0 %v751
        %753 = vmatprep.subr.mxu0 0.0
        %v754 = vand.u32 %v292, 4294901760
        %755 = vmatpush1.msra.mxu0 %v754
        %756 = vmatprep.subr.mxu0 0.0
        %v757 = vand.u32 %v291, 4294901760
        %758 = vmatpush1.msra.mxu0 %v757
        %759 = vmatprep.subr.mxu0 0.0
        %v760 = vand.u32 %v290, 4294901760
        %761 = vmatpush1.msra.mxu0 %v760
        %762 = vmatprep.subr.mxu0 0.0
        %v763 = vand.u32 %v289, 4294901760
        %764 = vmatpush1.msra.mxu0 %v763
        %765 = vmatprep.subr.mxu0 0.0
        %v766 = vand.u32 %v288, 4294901760
        %767 = vmatpush1.msra.mxu0 %v766
        %768 = vmatprep.subr.mxu0 0.0
        %v769 = vand.u32 %v287, 4294901760
        %770 = vmatpush1.msra.mxu0 %v769
        %771 = vmatprep.subr.mxu0 0.0
        %772 = vmatpush2.msra.mxu0 0.0
        %773 = vmatprep.subr.mxu0 0.0
        %774 = vmatpush2.msra.mxu0 0.0
        %775 = vmatprep.subr.mxu0 0.0
        %776 = vmatpush2.msra.mxu0 0.0
        %777 = vmatprep.subr.mxu0 0.0
        %778 = vmatpush2.msra.mxu0 0.0
        %779 = vmatprep.subr.mxu0 0.0
        %780 = vmatpush2.msra.mxu0 0.0
        %781 = vmatprep.subr.mxu0 0.0
        %782 = vmatpush2.msra.mxu0 0.0
        %783 = vmatprep.subr.mxu0 0.0
        %784 = vmatpush2.msra.mxu0 0.0
        %785 = vmatprep.subr.mxu0 0.0
        %786 = vmatpush2.msra.mxu0 0.0
        %787 = vmatprep.subr.mxu0 0.0
        %788 = vmatpush2.msra.mxu0 0.0
        %789 = vmatprep.subr.mxu0 0.0
        %790 = vmatpush2.msra.mxu0 0.0
        %791 = vmatprep.subr.mxu0 0.0
        %792 = vmatpush2.msra.mxu0 0.0
        %793 = vmatprep.subr.mxu0 0.0
        %794 = vmatpush2.msra.mxu0 0.0
        %795 = vmatprep.subr.mxu0 0.0
        %796 = vmatpush2.msra.mxu0 0.0
        %797 = vmatprep.subr.mxu0 0.0
        %798 = vmatpush2.msra.mxu0 0.0
        %799 = vmatprep.subr.mxu0 0.0
        %800 = vmatpush2.msra.mxu0 0.0
        %801 = vmatprep.subr.mxu0 0.0
        %802 = vmatpush2.msra.mxu0 0.0
        %803 = vmatprep.mubr.f32.mxu0 0.0
        %v804 = vand.u32 %v304, 4294901760
        %v805 = vsub.f32 %v304, %v804
        %v806 = vand.u32 %v805, 4294901760
        %807 = vmatmul.mubr.f32.gmra.mxu0 %v806
        %v808 = vpop.f32.mrf.mxu0
        %v809 = vadd.f32 %v699, %v808
        %v810 = vpop.f32.mrf.mxu0
        %811 = vmatprep.mubr.f32.mxu0 0.0
        %v812 = vand.u32 %v305, 4294901760
        %v813 = vsub.f32 %v305, %v812
        %v814 = vand.u32 %v813, 4294901760
        %815 = vmatmul.mubr.f32.gmra.mxu0 %v814
        %v816 = vpop.f32.mrf.mxu0
        %v817 = vadd.f32 %v706, %v816
        %v818 = vpop.f32.mrf.mxu0
        %819 = vmatprep.mubr.f32.mxu0 0.0
        %v820 = vand.u32 %v306, 4294901760
        %v821 = vsub.f32 %v306, %v820
        %v822 = vand.u32 %v821, 4294901760
        %823 = vmatmul.mubr.f32.gmra.mxu0 %v822
        %v824 = vpop.f32.mrf.mxu0
        %v825 = vadd.f32 %v713, %v824
        %v826 = vpop.f32.mrf.mxu0
        %827 = vmatprep.mubr.f32.mxu0 0.0
        %v828 = vand.u32 %v307, 4294901760
        %v829 = vsub.f32 %v307, %v828
        %v830 = vand.u32 %v829, 4294901760
        %831 = vmatmul.mubr.f32.gmra.mxu0 %v830
        %v832 = vpop.f32.mrf.mxu0
        %v833 = vadd.f32 %v720, %v832
        %v834 = vpop.f32.mrf.mxu0
        %835 = vdwg.mxu0
        %836 = vmatprep.subr.mxu0 0.0
        %v837 = vand.u32 %v302, 4294901760
        %v838 = vsub.f32 %v302, %v837
        %v839 = vand.u32 %v838, 4294901760
        %840 = vmatpush1.msra.mxu0 %v839
        %841 = vmatprep.subr.mxu0 0.0
        %v842 = vand.u32 %v301, 4294901760
        %v843 = vsub.f32 %v301, %v842
        %v844 = vand.u32 %v843, 4294901760
        %845 = vmatpush1.msra.mxu0 %v844
        %846 = vmatprep.subr.mxu0 0.0
        %v847 = vand.u32 %v300, 4294901760
        %v848 = vsub.f32 %v300, %v847
        %v849 = vand.u32 %v848, 4294901760
        %850 = vmatpush1.msra.mxu0 %v849
        %851 = vmatprep.subr.mxu0 0.0
        %v852 = vand.u32 %v299, 4294901760
        %v853 = vsub.f32 %v299, %v852
        %v854 = vand.u32 %v853, 4294901760
        %855 = vmatpush1.msra.mxu0 %v854
        %856 = vmatprep.subr.mxu0 0.0
        %v857 = vand.u32 %v298, 4294901760
        %v858 = vsub.f32 %v298, %v857
        %v859 = vand.u32 %v858, 4294901760
        %860 = vmatpush1.msra.mxu0 %v859
        %861 = vmatprep.subr.mxu0 0.0
        %v862 = vand.u32 %v297, 4294901760
        %v863 = vsub.f32 %v297, %v862
        %v864 = vand.u32 %v863, 4294901760
        %865 = vmatpush1.msra.mxu0 %v864
        %866 = vmatprep.subr.mxu0 0.0
        %v867 = vand.u32 %v296, 4294901760
        %v868 = vsub.f32 %v296, %v867
        %v869 = vand.u32 %v868, 4294901760
        %870 = vmatpush1.msra.mxu0 %v869
        %871 = vmatprep.subr.mxu0 0.0
        %v872 = vand.u32 %v295, 4294901760
        %v873 = vsub.f32 %v295, %v872
        %v874 = vand.u32 %v873, 4294901760
        %875 = vmatpush1.msra.mxu0 %v874
        %876 = vmatprep.subr.mxu0 0.0
        %v877 = vand.u32 %v294, 4294901760
        %v878 = vsub.f32 %v294, %v877
        %v879 = vand.u32 %v878, 4294901760
        %880 = vmatpush1.msra.mxu0 %v879
        %881 = vmatprep.subr.mxu0 0.0
        %v882 = vand.u32 %v293, 4294901760
        %v883 = vsub.f32 %v293, %v882
        %v884 = vand.u32 %v883, 4294901760
        %885 = vmatpush1.msra.mxu0 %v884
        %886 = vmatprep.subr.mxu0 0.0
        %v887 = vand.u32 %v292, 4294901760
        %v888 = vsub.f32 %v292, %v887
        %v889 = vand.u32 %v888, 4294901760
        %890 = vmatpush1.msra.mxu0 %v889
        %891 = vmatprep.subr.mxu0 0.0
        %v892 = vand.u32 %v291, 4294901760
        %v893 = vsub.f32 %v291, %v892
        %v894 = vand.u32 %v893, 4294901760
        %895 = vmatpush1.msra.mxu0 %v894
        %896 = vmatprep.subr.mxu0 0.0
        %v897 = vand.u32 %v290, 4294901760
        %v898 = vsub.f32 %v290, %v897
        %v899 = vand.u32 %v898, 4294901760
        %900 = vmatpush1.msra.mxu0 %v899
        %901 = vmatprep.subr.mxu0 0.0
        %v902 = vand.u32 %v289, 4294901760
        %v903 = vsub.f32 %v289, %v902
        %v904 = vand.u32 %v903, 4294901760
        %905 = vmatpush1.msra.mxu0 %v904
        %906 = vmatprep.subr.mxu0 0.0
        %v907 = vand.u32 %v288, 4294901760
        %v908 = vsub.f32 %v288, %v907
        %v909 = vand.u32 %v908, 4294901760
        %910 = vmatpush1.msra.mxu0 %v909
        %911 = vmatprep.subr.mxu0 0.0
        %v912 = vand.u32 %v287, 4294901760
        %v913 = vsub.f32 %v287, %v912
        %v914 = vand.u32 %v913, 4294901760
        %915 = vmatpush1.msra.mxu0 %v914
        %916 = vmatprep.subr.mxu0 0.0
        %917 = vmatpush2.msra.mxu0 0.0
        %918 = vmatprep.subr.mxu0 0.0
        %919 = vmatpush2.msra.mxu0 0.0
        %920 = vmatprep.subr.mxu0 0.0
        %921 = vmatpush2.msra.mxu0 0.0
        %922 = vmatprep.subr.mxu0 0.0
        %923 = vmatpush2.msra.mxu0 0.0
        %924 = vmatprep.subr.mxu0 0.0
        %925 = vmatpush2.msra.mxu0 0.0
        %926 = vmatprep.subr.mxu0 0.0
        %927 = vmatpush2.msra.mxu0 0.0
        %928 = vmatprep.subr.mxu0 0.0
        %929 = vmatpush2.msra.mxu0 0.0
        %930 = vmatprep.subr.mxu0 0.0
        %931 = vmatpush2.msra.mxu0 0.0
        %932 = vmatprep.subr.mxu0 0.0
        %933 = vmatpush2.msra.mxu0 0.0
        %934 = vmatprep.subr.mxu0 0.0
        %935 = vmatpush2.msra.mxu0 0.0
        %936 = vmatprep.subr.mxu0 0.0
        %937 = vmatpush2.msra.mxu0 0.0
        %938 = vmatprep.subr.mxu0 0.0
        %939 = vmatpush2.msra.mxu0 0.0
        %940 = vmatprep.subr.mxu0 0.0
        %941 = vmatpush2.msra.mxu0 0.0
        %942 = vmatprep.subr.mxu0 0.0
        %943 = vmatpush2.msra.mxu0 0.0
        %944 = vmatprep.subr.mxu0 0.0
        %945 = vmatpush2.msra.mxu0 0.0
        %946 = vmatprep.subr.mxu0 0.0
        %947 = vmatpush2.msra.mxu0 0.0
        %948 = vmatprep.mubr.f32.mxu0 0.0
        %v949 = vand.u32 %v304, 4294901760
        %950 = vmatmul.mubr.f32.gmra.mxu0 %v949
        %v951 = vpop.f32.mrf.mxu0
        %v952 = vadd.f32 %v809, %v951
        %v953 = vpop.f32.mrf.mxu0
        %954 = vmatprep.mubr.f32.mxu0 0.0
        %v955 = vand.u32 %v305, 4294901760
        %956 = vmatmul.mubr.f32.gmra.mxu0 %v955
        %v957 = vpop.f32.mrf.mxu0
        %v958 = vadd.f32 %v817, %v957
        %v959 = vpop.f32.mrf.mxu0
        %960 = vmatprep.mubr.f32.mxu0 0.0
        %v961 = vand.u32 %v306, 4294901760
        %962 = vmatmul.mubr.f32.gmra.mxu0 %v961
        %v963 = vpop.f32.mrf.mxu0
        %v964 = vadd.f32 %v825, %v963
        %v965 = vpop.f32.mrf.mxu0
        %966 = vmatprep.mubr.f32.mxu0 0.0
        %v967 = vand.u32 %v307, 4294901760
        %968 = vmatmul.mubr.f32.gmra.mxu0 %v967
        %v969 = vpop.f32.mrf.mxu0
        %v970 = vadd.f32 %v833, %v969
        %v971 = vpop.f32.mrf.mxu0
        %972 = vdwg.mxu0
        %973 = vmatprep.subr.mxu0 0.0
        %v974 = vand.u32 %v302, 4294901760
        %975 = vmatpush1.msra.mxu0 %v974
        %976 = vmatprep.subr.mxu0 0.0
        %v977 = vand.u32 %v301, 4294901760
        %978 = vmatpush1.msra.mxu0 %v977
        %979 = vmatprep.subr.mxu0 0.0
        %v980 = vand.u32 %v300, 4294901760
        %981 = vmatpush1.msra.mxu0 %v980
        %982 = vmatprep.subr.mxu0 0.0
        %v983 = vand.u32 %v299, 4294901760
        %984 = vmatpush1.msra.mxu0 %v983
        %985 = vmatprep.subr.mxu0 0.0
        %v986 = vand.u32 %v298, 4294901760
        %987 = vmatpush1.msra.mxu0 %v986
        %988 = vmatprep.subr.mxu0 0.0
        %v989 = vand.u32 %v297, 4294901760
        %990 = vmatpush1.msra.mxu0 %v989
        %991 = vmatprep.subr.mxu0 0.0
        %v992 = vand.u32 %v296, 4294901760
        %993 = vmatpush1.msra.mxu0 %v992
        %994 = vmatprep.subr.mxu0 0.0
        %v995 = vand.u32 %v295, 4294901760
        %996 = vmatpush1.msra.mxu0 %v995
        %997 = vmatprep.subr.mxu0 0.0
        %v998 = vand.u32 %v294, 4294901760
        %999 = vmatpush1.msra.mxu0 %v998
        %1000 = vmatprep.subr.mxu0 0.0
        %v1001 = vand.u32 %v293, 4294901760
        %1002 = vmatpush1.msra.mxu0 %v1001
        %1003 = vmatprep.subr.mxu0 0.0
        %v1004 = vand.u32 %v292, 4294901760
        %1005 = vmatpush1.msra.mxu0 %v1004
        %1006 = vmatprep.subr.mxu0 0.0
        %v1007 = vand.u32 %v291, 4294901760
        %1008 = vmatpush1.msra.mxu0 %v1007
        %1009 = vmatprep.subr.mxu0 0.0
        %v1010 = vand.u32 %v290, 4294901760
        %1011 = vmatpush1.msra.mxu0 %v1010
        %1012 = vmatprep.subr.mxu0 0.0
        %v1013 = vand.u32 %v289, 4294901760
        %1014 = vmatpush1.msra.mxu0 %v1013
        %1015 = vmatprep.subr.mxu0 0.0
        %v1016 = vand.u32 %v288, 4294901760
        %1017 = vmatpush1.msra.mxu0 %v1016
        %1018 = vmatprep.subr.mxu0 0.0
        %v1019 = vand.u32 %v287, 4294901760
        %1020 = vmatpush1.msra.mxu0 %v1019
        %1021 = vmatprep.subr.mxu0 0.0
        %1022 = vmatpush2.msra.mxu0 0.0
        %1023 = vmatprep.subr.mxu0 0.0
        %1024 = vmatpush2.msra.mxu0 0.0
        %1025 = vmatprep.subr.mxu0 0.0
        %1026 = vmatpush2.msra.mxu0 0.0
        %1027 = vmatprep.subr.mxu0 0.0
        %1028 = vmatpush2.msra.mxu0 0.0
        %1029 = vmatprep.subr.mxu0 0.0
        %1030 = vmatpush2.msra.mxu0 0.0
        %1031 = vmatprep.subr.mxu0 0.0
        %1032 = vmatpush2.msra.mxu0 0.0
        %1033 = vmatprep.subr.mxu0 0.0
        %1034 = vmatpush2.msra.mxu0 0.0
        %1035 = vmatprep.subr.mxu0 0.0
        %1036 = vmatpush2.msra.mxu0 0.0
        %1037 = vmatprep.subr.mxu0 0.0
        %1038 = vmatpush2.msra.mxu0 0.0
        %1039 = vmatprep.subr.mxu0 0.0
        %1040 = vmatpush2.msra.mxu0 0.0
        %1041 = vmatprep.subr.mxu0 0.0
        %1042 = vmatpush2.msra.mxu0 0.0
        %1043 = vmatprep.subr.mxu0 0.0
        %1044 = vmatpush2.msra.mxu0 0.0
        %1045 = vmatprep.subr.mxu0 0.0
        %1046 = vmatpush2.msra.mxu0 0.0
        %1047 = vmatprep.subr.mxu0 0.0
        %1048 = vmatpush2.msra.mxu0 0.0
        %1049 = vmatprep.subr.mxu0 0.0
        %1050 = vmatpush2.msra.mxu0 0.0
        %1051 = vmatprep.subr.mxu0 0.0
        %1052 = vmatpush2.msra.mxu0 0.0
        %1053 = vmatprep.mubr.f32.mxu0 0.0
        %v1054 = vand.u32 %v304, 4294901760
        %1055 = vmatmul.mubr.f32.gmra.mxu0 %v1054
        %v1056 = vpop.f32.mrf.mxu0
        %v1057 = vadd.f32 %v952, %v1056
        %v1058 = vpop.f32.mrf.mxu0
        %1059 = vmatprep.mubr.f32.mxu0 0.0
        %v1060 = vand.u32 %v305, 4294901760
        %1061 = vmatmul.mubr.f32.gmra.mxu0 %v1060
        %v1062 = vpop.f32.mrf.mxu0
        %v1063 = vadd.f32 %v958, %v1062
        %v1064 = vpop.f32.mrf.mxu0
        %1065 = vmatprep.mubr.f32.mxu0 0.0
        %v1066 = vand.u32 %v306, 4294901760
        %1067 = vmatmul.mubr.f32.gmra.mxu0 %v1066
        %v1068 = vpop.f32.mrf.mxu0
        %v1069 = vadd.f32 %v964, %v1068
        %v1070 = vpop.f32.mrf.mxu0
        %1071 = vmatprep.mubr.f32.mxu0 0.0
        %v1072 = vand.u32 %v307, 4294901760
        %1073 = vmatmul.mubr.f32.gmra.mxu0 %v1072
        %v1074 = vpop.f32.mrf.mxu0
        %v1075 = vadd.f32 %v970, %v1074
        %v1076 = vpop.f32.mrf.mxu0
        %1077 = vdwg.mxu0
        %1079 = vset.pattern.permute.xlu0 0
        %1080 = vperm.xlu0 %1079, %v278
        %v1081 = vpop.permute.xlu0 %1080
        %vm1083 = vcmask 261120
        %v1085 = vsel %vm1083, %v277, 0
        %1087 = vmatprep.subr.mxu0 0.0
        %1088 = vmatpush1.msra.mxu0 0.0
        %1089 = vmatprep.subr.mxu0 0.0
        %1090 = vmatpush1.msra.mxu0 0.0
        %1091 = vmatprep.subr.mxu0 0.0
        %1092 = vmatpush1.msra.mxu0 0.0
        %1093 = vmatprep.subr.mxu0 0.0
        %1094 = vmatpush1.msra.mxu0 0.0
        %1095 = vmatprep.subr.mxu0 0.0
        %1096 = vmatpush1.msra.mxu0 0.0
        %1097 = vmatprep.subr.mxu0 0.0
        %1098 = vmatpush1.msra.mxu0 0.0
        %1099 = vmatprep.subr.mxu0 0.0
        %1100 = vmatpush1.msra.mxu0 0.0
        %1101 = vmatprep.subr.mxu0 0.0
        %1102 = vmatpush1.msra.mxu0 0.0
        %1103 = vmatprep.subr.mxu0 0.0
        %1104 = vmatpush1.msra.mxu0 0.0
        %1105 = vmatprep.subr.mxu0 0.0
        %1106 = vmatpush1.msra.mxu0 0.0
        %1107 = vmatprep.subr.mxu0 0.0
        %1108 = vmatpush1.msra.mxu0 0.0
        %1109 = vmatprep.subr.mxu0 0.0
        %1110 = vmatpush1.msra.mxu0 0.0
        %1111 = vmatprep.subr.mxu0 0.0
        %v1112 = vand.u32 %v1075, 4294901760
        %1113 = vmatpush1.msra.mxu0 %v1112
        %1114 = vmatprep.subr.mxu0 0.0
        %v1115 = vand.u32 %v1069, 4294901760
        %1116 = vmatpush1.msra.mxu0 %v1115
        %1117 = vmatprep.subr.mxu0 0.0
        %v1118 = vand.u32 %v1063, 4294901760
        %1119 = vmatpush1.msra.mxu0 %v1118
        %1120 = vmatprep.subr.mxu0 0.0
        %v1121 = vand.u32 %v1057, 4294901760
        %1122 = vmatpush1.msra.mxu0 %v1121
        %1123 = vmatprep.subr.mxu0 0.0
        %1124 = vmatpush2.msra.mxu0 0.0
        %1125 = vmatprep.subr.mxu0 0.0
        %1126 = vmatpush2.msra.mxu0 0.0
        %1127 = vmatprep.subr.mxu0 0.0
        %1128 = vmatpush2.msra.mxu0 0.0
        %1129 = vmatprep.subr.mxu0 0.0
        %1130 = vmatpush2.msra.mxu0 0.0
        %1131 = vmatprep.subr.mxu0 0.0
        %1132 = vmatpush2.msra.mxu0 0.0
        %1133 = vmatprep.subr.mxu0 0.0
        %1134 = vmatpush2.msra.mxu0 0.0
        %1135 = vmatprep.subr.mxu0 0.0
        %1136 = vmatpush2.msra.mxu0 0.0
        %1137 = vmatprep.subr.mxu0 0.0
        %1138 = vmatpush2.msra.mxu0 0.0
        %1139 = vmatprep.subr.mxu0 0.0
        %1140 = vmatpush2.msra.mxu0 0.0
        %1141 = vmatprep.subr.mxu0 0.0
        %1142 = vmatpush2.msra.mxu0 0.0
        %1143 = vmatprep.subr.mxu0 0.0
        %1144 = vmatpush2.msra.mxu0 0.0
        %1145 = vmatprep.subr.mxu0 0.0
        %1146 = vmatpush2.msra.mxu0 0.0
        %1147 = vmatprep.subr.mxu0 0.0
        %1148 = vmatpush2.msra.mxu0 0.0
        %1149 = vmatprep.subr.mxu0 0.0
        %1150 = vmatpush2.msra.mxu0 0.0
        %1151 = vmatprep.subr.mxu0 0.0
        %1152 = vmatpush2.msra.mxu0 0.0
        %1153 = vmatprep.subr.mxu0 0.0
        %1154 = vmatpush2.msra.mxu0 0.0
        %1155 = vmatprep.mubr.f32.mxu0 0.0
        %v1156 = vand.u32 %v1085, 4294901760
        %v1157 = vsub.f32 %v1085, %v1156
        %v1158 = vand.u32 %v1157, 4294901760
        %v1159 = vsub.f32 %v1157, %v1158
        %v1160 = vand.u32 %v1159, 4294901760
        %1161 = vmatmul.mubr.f32.gmra.mxu0 %v1160
        %v1162 = vpop.f32.mrf.mxu0
        %v1163 = vadd.f32 %v1081, %v1162
        %v1164 = vpop.f32.mrf.mxu0
        %1165 = vdwg.mxu0
        %1166 = vmatprep.subr.mxu0 0.0
        %1167 = vmatpush1.msra.mxu0 0.0
        %1168 = vmatprep.subr.mxu0 0.0
        %1169 = vmatpush1.msra.mxu0 0.0
        %1170 = vmatprep.subr.mxu0 0.0
        %1171 = vmatpush1.msra.mxu0 0.0
        %1172 = vmatprep.subr.mxu0 0.0
        %1173 = vmatpush1.msra.mxu0 0.0
        %1174 = vmatprep.subr.mxu0 0.0
        %1175 = vmatpush1.msra.mxu0 0.0
        %1176 = vmatprep.subr.mxu0 0.0
        %1177 = vmatpush1.msra.mxu0 0.0
        %1178 = vmatprep.subr.mxu0 0.0
        %1179 = vmatpush1.msra.mxu0 0.0
        %1180 = vmatprep.subr.mxu0 0.0
        %1181 = vmatpush1.msra.mxu0 0.0
        %1182 = vmatprep.subr.mxu0 0.0
        %1183 = vmatpush1.msra.mxu0 0.0
        %1184 = vmatprep.subr.mxu0 0.0
        %1185 = vmatpush1.msra.mxu0 0.0
        %1186 = vmatprep.subr.mxu0 0.0
        %1187 = vmatpush1.msra.mxu0 0.0
        %1188 = vmatprep.subr.mxu0 0.0
        %1189 = vmatpush1.msra.mxu0 0.0
        %1190 = vmatprep.subr.mxu0 0.0
        %v1191 = vand.u32 %v1075, 4294901760
        %v1192 = vsub.f32 %v1075, %v1191
        %v1193 = vand.u32 %v1192, 4294901760
        %v1194 = vsub.f32 %v1192, %v1193
        %v1195 = vand.u32 %v1194, 4294901760
        %1196 = vmatpush1.msra.mxu0 %v1195
        %1197 = vmatprep.subr.mxu0 0.0
        %v1198 = vand.u32 %v1069, 4294901760
        %v1199 = vsub.f32 %v1069, %v1198
        %v1200 = vand.u32 %v1199, 4294901760
        %v1201 = vsub.f32 %v1199, %v1200
        %v1202 = vand.u32 %v1201, 4294901760
        %1203 = vmatpush1.msra.mxu0 %v1202
        %1204 = vmatprep.subr.mxu0 0.0
        %v1205 = vand.u32 %v1063, 4294901760
        %v1206 = vsub.f32 %v1063, %v1205
        %v1207 = vand.u32 %v1206, 4294901760
        %v1208 = vsub.f32 %v1206, %v1207
        %v1209 = vand.u32 %v1208, 4294901760
        %1210 = vmatpush1.msra.mxu0 %v1209
        %1211 = vmatprep.subr.mxu0 0.0
        %v1212 = vand.u32 %v1057, 4294901760
        %v1213 = vsub.f32 %v1057, %v1212
        %v1214 = vand.u32 %v1213, 4294901760
        %v1215 = vsub.f32 %v1213, %v1214
        %v1216 = vand.u32 %v1215, 4294901760
        %1217 = vmatpush1.msra.mxu0 %v1216
        %1218 = vmatprep.subr.mxu0 0.0
        %1219 = vmatpush2.msra.mxu0 0.0
        %1220 = vmatprep.subr.mxu0 0.0
        %1221 = vmatpush2.msra.mxu0 0.0
        %1222 = vmatprep.subr.mxu0 0.0
        %1223 = vmatpush2.msra.mxu0 0.0
        %1224 = vmatprep.subr.mxu0 0.0
        %1225 = vmatpush2.msra.mxu0 0.0
        %1226 = vmatprep.subr.mxu0 0.0
        %1227 = vmatpush2.msra.mxu0 0.0
        %1228 = vmatprep.subr.mxu0 0.0
        %1229 = vmatpush2.msra.mxu0 0.0
        %1230 = vmatprep.subr.mxu0 0.0
        %1231 = vmatpush2.msra.mxu0 0.0
        %1232 = vmatprep.subr.mxu0 0.0
        %1233 = vmatpush2.msra.mxu0 0.0
        %1234 = vmatprep.subr.mxu0 0.0
        %1235 = vmatpush2.msra.mxu0 0.0
        %1236 = vmatprep.subr.mxu0 0.0
        %1237 = vmatpush2.msra.mxu0 0.0
        %1238 = vmatprep.subr.mxu0 0.0
        %1239 = vmatpush2.msra.mxu0 0.0
        %1240 = vmatprep.subr.mxu0 0.0
        %1241 = vmatpush2.msra.mxu0 0.0
        %1242 = vmatprep.subr.mxu0 0.0
        %1243 = vmatpush2.msra.mxu0 0.0
        %1244 = vmatprep.subr.mxu0 0.0
        %1245 = vmatpush2.msra.mxu0 0.0
        %1246 = vmatprep.subr.mxu0 0.0
        %1247 = vmatpush2.msra.mxu0 0.0
        %1248 = vmatprep.subr.mxu0 0.0
        %1249 = vmatpush2.msra.mxu0 0.0
        %1250 = vmatprep.mubr.f32.mxu0 0.0
        %v1251 = vand.u32 %v1085, 4294901760
        %1252 = vmatmul.mubr.f32.gmra.mxu0 %v1251
        %v1253 = vpop.f32.mrf.mxu0
        %v1254 = vadd.f32 %v1163, %v1253
        %v1255 = vpop.f32.mrf.mxu0
        %1256 = vdwg.mxu0
        %1257 = vmatprep.subr.mxu0 0.0
        %1258 = vmatpush1.msra.mxu0 0.0
        %1259 = vmatprep.subr.mxu0 0.0
        %1260 = vmatpush1.msra.mxu0 0.0
        %1261 = vmatprep.subr.mxu0 0.0
        %1262 = vmatpush1.msra.mxu0 0.0
        %1263 = vmatprep.subr.mxu0 0.0
        %1264 = vmatpush1.msra.mxu0 0.0
        %1265 = vmatprep.subr.mxu0 0.0
        %1266 = vmatpush1.msra.mxu0 0.0
        %1267 = vmatprep.subr.mxu0 0.0
        %1268 = vmatpush1.msra.mxu0 0.0
        %1269 = vmatprep.subr.mxu0 0.0
        %1270 = vmatpush1.msra.mxu0 0.0
        %1271 = vmatprep.subr.mxu0 0.0
        %1272 = vmatpush1.msra.mxu0 0.0
        %1273 = vmatprep.subr.mxu0 0.0
        %1274 = vmatpush1.msra.mxu0 0.0
        %1275 = vmatprep.subr.mxu0 0.0
        %1276 = vmatpush1.msra.mxu0 0.0
        %1277 = vmatprep.subr.mxu0 0.0
        %1278 = vmatpush1.msra.mxu0 0.0
        %1279 = vmatprep.subr.mxu0 0.0
        %1280 = vmatpush1.msra.mxu0 0.0
        %1281 = vmatprep.subr.mxu0 0.0
        %v1282 = vand.u32 %v1075, 4294901760
        %v1283 = vsub.f32 %v1075, %v1282
        %1284 = vmatpush1.msra.mxu0 %v1283
        %1285 = vmatprep.subr.mxu0 0.0
        %v1286 = vand.u32 %v1069, 4294901760
        %v1287 = vsub.f32 %v1069, %v1286
        %1288 = vmatpush1.msra.mxu0 %v1287
        %1289 = vmatprep.subr.mxu0 0.0
        %v1290 = vand.u32 %v1063, 4294901760
        %v1291 = vsub.f32 %v1063, %v1290
        %1292 = vmatpush1.msra.mxu0 %v1291
        %1293 = vmatprep.subr.mxu0 0.0
        %v1294 = vand.u32 %v1057, 4294901760
        %v1295 = vsub.f32 %v1057, %v1294
        %1296 = vmatpush1.msra.mxu0 %v1295
        %1297 = vmatprep.subr.mxu0 0.0
        %1298 = vmatpush2.msra.mxu0 0.0
        %1299 = vmatprep.subr.mxu0 0.0
        %1300 = vmatpush2.msra.mxu0 0.0
        %1301 = vmatprep.subr.mxu0 0.0
        %1302 = vmatpush2.msra.mxu0 0.0
        %1303 = vmatprep.subr.mxu0 0.0
        %1304 = vmatpush2.msra.mxu0 0.0
        %1305 = vmatprep.subr.mxu0 0.0
        %1306 = vmatpush2.msra.mxu0 0.0
        %1307 = vmatprep.subr.mxu0 0.0
        %1308 = vmatpush2.msra.mxu0 0.0
        %1309 = vmatprep.subr.mxu0 0.0
        %1310 = vmatpush2.msra.mxu0 0.0
        %1311 = vmatprep.subr.mxu0 0.0
        %1312 = vmatpush2.msra.mxu0 0.0
        %1313 = vmatprep.subr.mxu0 0.0
        %1314 = vmatpush2.msra.mxu0 0.0
        %1315 = vmatprep.subr.mxu0 0.0
        %1316 = vmatpush2.msra.mxu0 0.0
        %1317 = vmatprep.subr.mxu0 0.0
        %1318 = vmatpush2.msra.mxu0 0.0
        %1319 = vmatprep.subr.mxu0 0.0
        %1320 = vmatpush2.msra.mxu0 0.0
        %1321 = vmatprep.subr.mxu0 0.0
        %1322 = vmatpush2.msra.mxu0 0.0
        %1323 = vmatprep.subr.mxu0 0.0
        %1324 = vmatpush2.msra.mxu0 0.0
        %1325 = vmatprep.subr.mxu0 0.0
        %1326 = vmatpush2.msra.mxu0 0.0
        %1327 = vmatprep.subr.mxu0 0.0
        %1328 = vmatpush2.msra.mxu0 0.0
        %1329 = vmatprep.mubr.f32.mxu0 0.0
        %v1330 = vand.u32 %v1085, 4294901760
        %v1331 = vsub.f32 %v1085, %v1330
        %1332 = vmatmul.mubr.f32.gmra.mxu0 %v1331
        %v1333 = vpop.f32.mrf.mxu0
        %v1334 = vadd.f32 %v1254, %v1333
        %v1335 = vpop.f32.mrf.mxu0
        %1336 = vdwg.mxu0
        %1337 = vmatprep.subr.mxu0 0.0
        %1338 = vmatpush1.msra.mxu0 0.0
        %1339 = vmatprep.subr.mxu0 0.0
        %1340 = vmatpush1.msra.mxu0 0.0
        %1341 = vmatprep.subr.mxu0 0.0
        %1342 = vmatpush1.msra.mxu0 0.0
        %1343 = vmatprep.subr.mxu0 0.0
        %1344 = vmatpush1.msra.mxu0 0.0
        %1345 = vmatprep.subr.mxu0 0.0
        %1346 = vmatpush1.msra.mxu0 0.0
        %1347 = vmatprep.subr.mxu0 0.0
        %1348 = vmatpush1.msra.mxu0 0.0
        %1349 = vmatprep.subr.mxu0 0.0
        %1350 = vmatpush1.msra.mxu0 0.0
        %1351 = vmatprep.subr.mxu0 0.0
        %1352 = vmatpush1.msra.mxu0 0.0
        %1353 = vmatprep.subr.mxu0 0.0
        %1354 = vmatpush1.msra.mxu0 0.0
        %1355 = vmatprep.subr.mxu0 0.0
        %1356 = vmatpush1.msra.mxu0 0.0
        %1357 = vmatprep.subr.mxu0 0.0
        %1358 = vmatpush1.msra.mxu0 0.0
        %1359 = vmatprep.subr.mxu0 0.0
        %1360 = vmatpush1.msra.mxu0 0.0
        %1361 = vmatprep.subr.mxu0 0.0
        %v1362 = vand.u32 %v1075, 4294901760
        %1363 = vmatpush1.msra.mxu0 %v1362
        %1364 = vmatprep.subr.mxu0 0.0
        %v1365 = vand.u32 %v1069, 4294901760
        %1366 = vmatpush1.msra.mxu0 %v1365
        %1367 = vmatprep.subr.mxu0 0.0
        %v1368 = vand.u32 %v1063, 4294901760
        %1369 = vmatpush1.msra.mxu0 %v1368
        %1370 = vmatprep.subr.mxu0 0.0
        %v1371 = vand.u32 %v1057, 4294901760
        %1372 = vmatpush1.msra.mxu0 %v1371
        %1373 = vmatprep.subr.mxu0 0.0
        %1374 = vmatpush2.msra.mxu0 0.0
        %1375 = vmatprep.subr.mxu0 0.0
        %1376 = vmatpush2.msra.mxu0 0.0
        %1377 = vmatprep.subr.mxu0 0.0
        %1378 = vmatpush2.msra.mxu0 0.0
        %1379 = vmatprep.subr.mxu0 0.0
        %1380 = vmatpush2.msra.mxu0 0.0
        %1381 = vmatprep.subr.mxu0 0.0
        %1382 = vmatpush2.msra.mxu0 0.0
        %1383 = vmatprep.subr.mxu0 0.0
        %1384 = vmatpush2.msra.mxu0 0.0
        %1385 = vmatprep.subr.mxu0 0.0
        %1386 = vmatpush2.msra.mxu0 0.0
        %1387 = vmatprep.subr.mxu0 0.0
        %1388 = vmatpush2.msra.mxu0 0.0
        %1389 = vmatprep.subr.mxu0 0.0
        %1390 = vmatpush2.msra.mxu0 0.0
        %1391 = vmatprep.subr.mxu0 0.0
        %1392 = vmatpush2.msra.mxu0 0.0
        %1393 = vmatprep.subr.mxu0 0.0
        %1394 = vmatpush2.msra.mxu0 0.0
        %1395 = vmatprep.subr.mxu0 0.0
        %1396 = vmatpush2.msra.mxu0 0.0
        %1397 = vmatprep.subr.mxu0 0.0
        %1398 = vmatpush2.msra.mxu0 0.0
        %1399 = vmatprep.subr.mxu0 0.0
        %1400 = vmatpush2.msra.mxu0 0.0
        %1401 = vmatprep.subr.mxu0 0.0
        %1402 = vmatpush2.msra.mxu0 0.0
        %1403 = vmatprep.subr.mxu0 0.0
        %1404 = vmatpush2.msra.mxu0 0.0
        %1405 = vmatprep.mubr.f32.mxu0 0.0
        %v1406 = vand.u32 %v1085, 4294901760
        %v1407 = vsub.f32 %v1085, %v1406
        %v1408 = vand.u32 %v1407, 4294901760
        %1409 = vmatmul.mubr.f32.gmra.mxu0 %v1408
        %v1410 = vpop.f32.mrf.mxu0
        %v1411 = vadd.f32 %v1334, %v1410
        %v1412 = vpop.f32.mrf.mxu0
        %1413 = vdwg.mxu0
        %1414 = vmatprep.subr.mxu0 0.0
        %1415 = vmatpush1.msra.mxu0 0.0
        %1416 = vmatprep.subr.mxu0 0.0
        %1417 = vmatpush1.msra.mxu0 0.0
        %1418 = vmatprep.subr.mxu0 0.0
        %1419 = vmatpush1.msra.mxu0 0.0
        %1420 = vmatprep.subr.mxu0 0.0
        %1421 = vmatpush1.msra.mxu0 0.0
        %1422 = vmatprep.subr.mxu0 0.0
        %1423 = vmatpush1.msra.mxu0 0.0
        %1424 = vmatprep.subr.mxu0 0.0
        %1425 = vmatpush1.msra.mxu0 0.0
        %1426 = vmatprep.subr.mxu0 0.0
        %1427 = vmatpush1.msra.mxu0 0.0
        %1428 = vmatprep.subr.mxu0 0.0
        %1429 = vmatpush1.msra.mxu0 0.0
        %1430 = vmatprep.subr.mxu0 0.0
        %1431 = vmatpush1.msra.mxu0 0.0
        %1432 = vmatprep.subr.mxu0 0.0
        %1433 = vmatpush1.msra.mxu0 0.0
        %1434 = vmatprep.subr.mxu0 0.0
        %1435 = vmatpush1.msra.mxu0 0.0
        %1436 = vmatprep.subr.mxu0 0.0
        %1437 = vmatpush1.msra.mxu0 0.0
        %1438 = vmatprep.subr.mxu0 0.0
        %v1439 = vand.u32 %v1075, 4294901760
        %v1440 = vsub.f32 %v1075, %v1439
        %v1441 = vand.u32 %v1440, 4294901760
        %1442 = vmatpush1.msra.mxu0 %v1441
        %1443 = vmatprep.subr.mxu0 0.0
        %v1444 = vand.u32 %v1069, 4294901760
        %v1445 = vsub.f32 %v1069, %v1444
        %v1446 = vand.u32 %v1445, 4294901760
        %1447 = vmatpush1.msra.mxu0 %v1446
        %1448 = vmatprep.subr.mxu0 0.0
        %v1449 = vand.u32 %v1063, 4294901760
        %v1450 = vsub.f32 %v1063, %v1449
        %v1451 = vand.u32 %v1450, 4294901760
        %1452 = vmatpush1.msra.mxu0 %v1451
        %1453 = vmatprep.subr.mxu0 0.0
        %v1454 = vand.u32 %v1057, 4294901760
        %v1455 = vsub.f32 %v1057, %v1454
        %v1456 = vand.u32 %v1455, 4294901760
        %1457 = vmatpush1.msra.mxu0 %v1456
        %1458 = vmatprep.subr.mxu0 0.0
        %1459 = vmatpush2.msra.mxu0 0.0
        %1460 = vmatprep.subr.mxu0 0.0
        %1461 = vmatpush2.msra.mxu0 0.0
        %1462 = vmatprep.subr.mxu0 0.0
        %1463 = vmatpush2.msra.mxu0 0.0
        %1464 = vmatprep.subr.mxu0 0.0
        %1465 = vmatpush2.msra.mxu0 0.0
        %1466 = vmatprep.subr.mxu0 0.0
        %1467 = vmatpush2.msra.mxu0 0.0
        %1468 = vmatprep.subr.mxu0 0.0
        %1469 = vmatpush2.msra.mxu0 0.0
        %1470 = vmatprep.subr.mxu0 0.0
        %1471 = vmatpush2.msra.mxu0 0.0
        %1472 = vmatprep.subr.mxu0 0.0
        %1473 = vmatpush2.msra.mxu0 0.0
        %1474 = vmatprep.subr.mxu0 0.0
        %1475 = vmatpush2.msra.mxu0 0.0
        %1476 = vmatprep.subr.mxu0 0.0
        %1477 = vmatpush2.msra.mxu0 0.0
        %1478 = vmatprep.subr.mxu0 0.0
        %1479 = vmatpush2.msra.mxu0 0.0
        %1480 = vmatprep.subr.mxu0 0.0
        %1481 = vmatpush2.msra.mxu0 0.0
        %1482 = vmatprep.subr.mxu0 0.0
        %1483 = vmatpush2.msra.mxu0 0.0
        %1484 = vmatprep.subr.mxu0 0.0
        %1485 = vmatpush2.msra.mxu0 0.0
        %1486 = vmatprep.subr.mxu0 0.0
        %1487 = vmatpush2.msra.mxu0 0.0
        %1488 = vmatprep.subr.mxu0 0.0
        %1489 = vmatpush2.msra.mxu0 0.0
        %1490 = vmatprep.mubr.f32.mxu0 0.0
        %v1491 = vand.u32 %v1085, 4294901760
        %1492 = vmatmul.mubr.f32.gmra.mxu0 %v1491
        %v1493 = vpop.f32.mrf.mxu0
        %v1494 = vadd.f32 %v1411, %v1493
        %v1495 = vpop.f32.mrf.mxu0
        %1496 = vdwg.mxu0
        %1497 = vmatprep.subr.mxu0 0.0
        %1498 = vmatpush1.msra.mxu0 0.0
        %1499 = vmatprep.subr.mxu0 0.0
        %1500 = vmatpush1.msra.mxu0 0.0
        %1501 = vmatprep.subr.mxu0 0.0
        %1502 = vmatpush1.msra.mxu0 0.0
        %1503 = vmatprep.subr.mxu0 0.0
        %1504 = vmatpush1.msra.mxu0 0.0
        %1505 = vmatprep.subr.mxu0 0.0
        %1506 = vmatpush1.msra.mxu0 0.0
        %1507 = vmatprep.subr.mxu0 0.0
        %1508 = vmatpush1.msra.mxu0 0.0
        %1509 = vmatprep.subr.mxu0 0.0
        %1510 = vmatpush1.msra.mxu0 0.0
        %1511 = vmatprep.subr.mxu0 0.0
        %1512 = vmatpush1.msra.mxu0 0.0
        %1513 = vmatprep.subr.mxu0 0.0
        %1514 = vmatpush1.msra.mxu0 0.0
        %1515 = vmatprep.subr.mxu0 0.0
        %1516 = vmatpush1.msra.mxu0 0.0
        %1517 = vmatprep.subr.mxu0 0.0
        %1518 = vmatpush1.msra.mxu0 0.0
        %1519 = vmatprep.subr.mxu0 0.0
        %1520 = vmatpush1.msra.mxu0 0.0
        %1521 = vmatprep.subr.mxu0 0.0
        %v1522 = vand.u32 %v1075, 4294901760
        %1523 = vmatpush1.msra.mxu0 %v1522
        %1524 = vmatprep.subr.mxu0 0.0
        %v1525 = vand.u32 %v1069, 4294901760
        %1526 = vmatpush1.msra.mxu0 %v1525
        %1527 = vmatprep.subr.mxu0 0.0
        %v1528 = vand.u32 %v1063, 4294901760
        %1529 = vmatpush1.msra.mxu0 %v1528
        %1530 = vmatprep.subr.mxu0 0.0
        %v1531 = vand.u32 %v1057, 4294901760
        %1532 = vmatpush1.msra.mxu0 %v1531
        %1533 = vmatprep.subr.mxu0 0.0
        %1534 = vmatpush2.msra.mxu0 0.0
        %1535 = vmatprep.subr.mxu0 0.0
        %1536 = vmatpush2.msra.mxu0 0.0
        %1537 = vmatprep.subr.mxu0 0.0
        %1538 = vmatpush2.msra.mxu0 0.0
        %1539 = vmatprep.subr.mxu0 0.0
        %1540 = vmatpush2.msra.mxu0 0.0
        %1541 = vmatprep.subr.mxu0 0.0
        %1542 = vmatpush2.msra.mxu0 0.0
        %1543 = vmatprep.subr.mxu0 0.0
        %1544 = vmatpush2.msra.mxu0 0.0
        %1545 = vmatprep.subr.mxu0 0.0
        %1546 = vmatpush2.msra.mxu0 0.0
        %1547 = vmatprep.subr.mxu0 0.0
        %1548 = vmatpush2.msra.mxu0 0.0
        %1549 = vmatprep.subr.mxu0 0.0
        %1550 = vmatpush2.msra.mxu0 0.0
        %1551 = vmatprep.subr.mxu0 0.0
        %1552 = vmatpush2.msra.mxu0 0.0
        %1553 = vmatprep.subr.mxu0 0.0
        %1554 = vmatpush2.msra.mxu0 0.0
        %1555 = vmatprep.subr.mxu0 0.0
        %1556 = vmatpush2.msra.mxu0 0.0
        %1557 = vmatprep.subr.mxu0 0.0
        %1558 = vmatpush2.msra.mxu0 0.0
        %1559 = vmatprep.subr.mxu0 0.0
        %1560 = vmatpush2.msra.mxu0 0.0
        %1561 = vmatprep.subr.mxu0 0.0
        %1562 = vmatpush2.msra.mxu0 0.0
        %1563 = vmatprep.subr.mxu0 0.0
        %1564 = vmatpush2.msra.mxu0 0.0
        %1565 = vmatprep.mubr.f32.mxu0 0.0
        %v1566 = vand.u32 %v1085, 4294901760
        %1567 = vmatmul.mubr.f32.gmra.mxu0 %v1566
        %v1568 = vpop.f32.mrf.mxu0
        %v1569 = vadd.f32 %v1494, %v1568
        %v1570 = vpop.f32.mrf.mxu0
        %1571 = vdwg.mxu0
        %v1572 = vmax.f32 %v1569, 0.0
        %1574 = vset.pattern.permute.xlu0 0
        %1575 = vperm.xlu0 %1574, %v283
        %v1576 = vpop.permute.xlu0 %1575
        %1579 = vset.pattern.permute.xlu0 0
        %1580 = vperm.xlu0 %1579, %v284
        %v1581 = vpop.permute.xlu0 %1580
        %1584 = vset.pattern.permute.xlu0 0
        %1585 = vperm.xlu0 %1584, %v285
        %v1586 = vpop.permute.xlu0 %1585
        %1589 = vset.pattern.permute.xlu0 0
        %1590 = vperm.xlu0 %1589, %v286
        %v1591 = vpop.permute.xlu0 %1590
        %vm1593 = vcmask 15360
        %v1595 = vsel %vm1593, %v279, 0
        %v1598 = vsel %vm1593, %v280, 0
        %v1601 = vsel %vm1593, %v281, 0
        %v1604 = vsel %vm1593, %v282, 0
        %vm1606 = vcmask 1041408
        %v1608 = vsel %vm1606, %v1572, 0
        %1610 = vmatprep.subr.mxu0 0.0
        %1611 = vmatpush1.msra.mxu0 0.0
        %1612 = vmatprep.subr.mxu0 0.0
        %1613 = vmatpush1.msra.mxu0 0.0
        %1614 = vmatprep.subr.mxu0 0.0
        %1615 = vmatpush1.msra.mxu0 0.0
        %1616 = vmatprep.subr.mxu0 0.0
        %1617 = vmatpush1.msra.mxu0 0.0
        %1618 = vmatprep.subr.mxu0 0.0
        %1619 = vmatpush1.msra.mxu0 0.0
        %1620 = vmatprep.subr.mxu0 0.0
        %1621 = vmatpush1.msra.mxu0 0.0
        %1622 = vmatprep.subr.mxu0 0.0
        %1623 = vmatpush1.msra.mxu0 0.0
        %1624 = vmatprep.subr.mxu0 0.0
        %1625 = vmatpush1.msra.mxu0 0.0
        %1626 = vmatprep.subr.mxu0 0.0
        %1627 = vmatpush1.msra.mxu0 0.0
        %1628 = vmatprep.subr.mxu0 0.0
        %1629 = vmatpush1.msra.mxu0 0.0
        %1630 = vmatprep.subr.mxu0 0.0
        %1631 = vmatpush1.msra.mxu0 0.0
        %1632 = vmatprep.subr.mxu0 0.0
        %1633 = vmatpush1.msra.mxu0 0.0
        %1634 = vmatprep.subr.mxu0 0.0
        %1635 = vmatpush1.msra.mxu0 0.0
        %1636 = vmatprep.subr.mxu0 0.0
        %1637 = vmatpush1.msra.mxu0 0.0
        %1638 = vmatprep.subr.mxu0 0.0
        %1639 = vmatpush1.msra.mxu0 0.0
        %1640 = vmatprep.subr.mxu0 0.0
        %v1641 = vand.u32 %v1608, 4294901760
        %1642 = vmatpush1.msra.mxu0 %v1641
        %1643 = vmatprep.subr.mxu0 0.0
        %1644 = vmatpush2.msra.mxu0 0.0
        %1645 = vmatprep.subr.mxu0 0.0
        %1646 = vmatpush2.msra.mxu0 0.0
        %1647 = vmatprep.subr.mxu0 0.0
        %1648 = vmatpush2.msra.mxu0 0.0
        %1649 = vmatprep.subr.mxu0 0.0
        %1650 = vmatpush2.msra.mxu0 0.0
        %1651 = vmatprep.subr.mxu0 0.0
        %1652 = vmatpush2.msra.mxu0 0.0
        %1653 = vmatprep.subr.mxu0 0.0
        %1654 = vmatpush2.msra.mxu0 0.0
        %1655 = vmatprep.subr.mxu0 0.0
        %1656 = vmatpush2.msra.mxu0 0.0
        %1657 = vmatprep.subr.mxu0 0.0
        %1658 = vmatpush2.msra.mxu0 0.0
        %1659 = vmatprep.subr.mxu0 0.0
        %1660 = vmatpush2.msra.mxu0 0.0
        %1661 = vmatprep.subr.mxu0 0.0
        %1662 = vmatpush2.msra.mxu0 0.0
        %1663 = vmatprep.subr.mxu0 0.0
        %1664 = vmatpush2.msra.mxu0 0.0
        %1665 = vmatprep.subr.mxu0 0.0
        %1666 = vmatpush2.msra.mxu0 0.0
        %1667 = vmatprep.subr.mxu0 0.0
        %1668 = vmatpush2.msra.mxu0 0.0
        %1669 = vmatprep.subr.mxu0 0.0
        %1670 = vmatpush2.msra.mxu0 0.0
        %1671 = vmatprep.subr.mxu0 0.0
        %1672 = vmatpush2.msra.mxu0 0.0
        %1673 = vmatprep.subr.mxu0 0.0
        %1674 = vmatpush2.msra.mxu0 0.0
        %1675 = vmatprep.mubr.f32.mxu0 0.0
        %v1676 = vand.u32 %v1595, 4294901760
        %v1677 = vsub.f32 %v1595, %v1676
        %v1678 = vand.u32 %v1677, 4294901760
        %v1679 = vsub.f32 %v1677, %v1678
        %v1680 = vand.u32 %v1679, 4294901760
        %1681 = vmatmul.mubr.f32.gmra.mxu0 %v1680
        %v1682 = vpop.f32.mrf.mxu0
        %v1683 = vadd.f32 %v1576, %v1682
        %v1684 = vpop.f32.mrf.mxu0
        %1685 = vmatprep.mubr.f32.mxu0 0.0
        %v1686 = vand.u32 %v1598, 4294901760
        %v1687 = vsub.f32 %v1598, %v1686
        %v1688 = vand.u32 %v1687, 4294901760
        %v1689 = vsub.f32 %v1687, %v1688
        %v1690 = vand.u32 %v1689, 4294901760
        %1691 = vmatmul.mubr.f32.gmra.mxu0 %v1690
        %v1692 = vpop.f32.mrf.mxu0
        %v1693 = vadd.f32 %v1581, %v1692
        %v1694 = vpop.f32.mrf.mxu0
        %1695 = vmatprep.mubr.f32.mxu0 0.0
        %v1696 = vand.u32 %v1601, 4294901760
        %v1697 = vsub.f32 %v1601, %v1696
        %v1698 = vand.u32 %v1697, 4294901760
        %v1699 = vsub.f32 %v1697, %v1698
        %v1700 = vand.u32 %v1699, 4294901760
        %1701 = vmatmul.mubr.f32.gmra.mxu0 %v1700
        %v1702 = vpop.f32.mrf.mxu0
        %v1703 = vadd.f32 %v1586, %v1702
        %v1704 = vpop.f32.mrf.mxu0
        %1705 = vmatprep.mubr.f32.mxu0 0.0
        %v1706 = vand.u32 %v1604, 4294901760
        %v1707 = vsub.f32 %v1604, %v1706
        %v1708 = vand.u32 %v1707, 4294901760
        %v1709 = vsub.f32 %v1707, %v1708
        %v1710 = vand.u32 %v1709, 4294901760
        %1711 = vmatmul.mubr.f32.gmra.mxu0 %v1710
        %v1712 = vpop.f32.mrf.mxu0
        %v1713 = vadd.f32 %v1591, %v1712
        %v1714 = vpop.f32.mrf.mxu0
        %1715 = vdwg.mxu0
        %1716 = vmatprep.subr.mxu0 0.0
        %1717 = vmatpush1.msra.mxu0 0.0
        %1718 = vmatprep.subr.mxu0 0.0
        %1719 = vmatpush1.msra.mxu0 0.0
        %1720 = vmatprep.subr.mxu0 0.0
        %1721 = vmatpush1.msra.mxu0 0.0
        %1722 = vmatprep.subr.mxu0 0.0
        %1723 = vmatpush1.msra.mxu0 0.0
        %1724 = vmatprep.subr.mxu0 0.0
        %1725 = vmatpush1.msra.mxu0 0.0
        %1726 = vmatprep.subr.mxu0 0.0
        %1727 = vmatpush1.msra.mxu0 0.0
        %1728 = vmatprep.subr.mxu0 0.0
        %1729 = vmatpush1.msra.mxu0 0.0
        %1730 = vmatprep.subr.mxu0 0.0
        %1731 = vmatpush1.msra.mxu0 0.0
        %1732 = vmatprep.subr.mxu0 0.0
        %1733 = vmatpush1.msra.mxu0 0.0
        %1734 = vmatprep.subr.mxu0 0.0
        %1735 = vmatpush1.msra.mxu0 0.0
        %1736 = vmatprep.subr.mxu0 0.0
        %1737 = vmatpush1.msra.mxu0 0.0
        %1738 = vmatprep.subr.mxu0 0.0
        %1739 = vmatpush1.msra.mxu0 0.0
        %1740 = vmatprep.subr.mxu0 0.0
        %1741 = vmatpush1.msra.mxu0 0.0
        %1742 = vmatprep.subr.mxu0 0.0
        %1743 = vmatpush1.msra.mxu0 0.0
        %1744 = vmatprep.subr.mxu0 0.0
        %1745 = vmatpush1.msra.mxu0 0.0
        %1746 = vmatprep.subr.mxu0 0.0
        %v1747 = vand.u32 %v1608, 4294901760
        %v1748 = vsub.f32 %v1608, %v1747
        %v1749 = vand.u32 %v1748, 4294901760
        %v1750 = vsub.f32 %v1748, %v1749
        %v1751 = vand.u32 %v1750, 4294901760
        %1752 = vmatpush1.msra.mxu0 %v1751
        %1753 = vmatprep.subr.mxu0 0.0
        %1754 = vmatpush2.msra.mxu0 0.0
        %1755 = vmatprep.subr.mxu0 0.0
        %1756 = vmatpush2.msra.mxu0 0.0
        %1757 = vmatprep.subr.mxu0 0.0
        %1758 = vmatpush2.msra.mxu0 0.0
        %1759 = vmatprep.subr.mxu0 0.0
        %1760 = vmatpush2.msra.mxu0 0.0
        %1761 = vmatprep.subr.mxu0 0.0
        %1762 = vmatpush2.msra.mxu0 0.0
        %1763 = vmatprep.subr.mxu0 0.0
        %1764 = vmatpush2.msra.mxu0 0.0
        %1765 = vmatprep.subr.mxu0 0.0
        %1766 = vmatpush2.msra.mxu0 0.0
        %1767 = vmatprep.subr.mxu0 0.0
        %1768 = vmatpush2.msra.mxu0 0.0
        %1769 = vmatprep.subr.mxu0 0.0
        %1770 = vmatpush2.msra.mxu0 0.0
        %1771 = vmatprep.subr.mxu0 0.0
        %1772 = vmatpush2.msra.mxu0 0.0
        %1773 = vmatprep.subr.mxu0 0.0
        %1774 = vmatpush2.msra.mxu0 0.0
        %1775 = vmatprep.subr.mxu0 0.0
        %1776 = vmatpush2.msra.mxu0 0.0
        %1777 = vmatprep.subr.mxu0 0.0
        %1778 = vmatpush2.msra.mxu0 0.0
        %1779 = vmatprep.subr.mxu0 0.0
        %1780 = vmatpush2.msra.mxu0 0.0
        %1781 = vmatprep.subr.mxu0 0.0
        %1782 = vmatpush2.msra.mxu0 0.0
        %1783 = vmatprep.subr.mxu0 0.0
        %1784 = vmatpush2.msra.mxu0 0.0
        %1785 = vmatprep.mubr.f32.mxu0 0.0
        %v1786 = vand.u32 %v1595, 4294901760
        %1787 = vmatmul.mubr.f32.gmra.mxu0 %v1786
        %v1788 = vpop.f32.mrf.mxu0
        %v1789 = vadd.f32 %v1683, %v1788
        %v1790 = vpop.f32.mrf.mxu0
        %1791 = vmatprep.mubr.f32.mxu0 0.0
        %v1792 = vand.u32 %v1598, 4294901760
        %1793 = vmatmul.mubr.f32.gmra.mxu0 %v1792
        %v1794 = vpop.f32.mrf.mxu0
        %v1795 = vadd.f32 %v1693, %v1794
        %v1796 = vpop.f32.mrf.mxu0
        %1797 = vmatprep.mubr.f32.mxu0 0.0
        %v1798 = vand.u32 %v1601, 4294901760
        %1799 = vmatmul.mubr.f32.gmra.mxu0 %v1798
        %v1800 = vpop.f32.mrf.mxu0
        %v1801 = vadd.f32 %v1703, %v1800
        %v1802 = vpop.f32.mrf.mxu0
        %1803 = vmatprep.mubr.f32.mxu0 0.0
        %v1804 = vand.u32 %v1604, 4294901760
        %1805 = vmatmul.mubr.f32.gmra.mxu0 %v1804
        %v1806 = vpop.f32.mrf.mxu0
        %v1807 = vadd.f32 %v1713, %v1806
        %v1808 = vpop.f32.mrf.mxu0
        %1809 = vdwg.mxu0
        %1810 = vmatprep.subr.mxu0 0.0
        %1811 = vmatpush1.msra.mxu0 0.0
        %1812 = vmatprep.subr.mxu0 0.0
        %1813 = vmatpush1.msra.mxu0 0.0
        %1814 = vmatprep.subr.mxu0 0.0
        %1815 = vmatpush1.msra.mxu0 0.0
        %1816 = vmatprep.subr.mxu0 0.0
        %1817 = vmatpush1.msra.mxu0 0.0
        %1818 = vmatprep.subr.mxu0 0.0
        %1819 = vmatpush1.msra.mxu0 0.0
        %1820 = vmatprep.subr.mxu0 0.0
        %1821 = vmatpush1.msra.mxu0 0.0
        %1822 = vmatprep.subr.mxu0 0.0
        %1823 = vmatpush1.msra.mxu0 0.0
        %1824 = vmatprep.subr.mxu0 0.0
        %1825 = vmatpush1.msra.mxu0 0.0
        %1826 = vmatprep.subr.mxu0 0.0
        %1827 = vmatpush1.msra.mxu0 0.0
        %1828 = vmatprep.subr.mxu0 0.0
        %1829 = vmatpush1.msra.mxu0 0.0
        %1830 = vmatprep.subr.mxu0 0.0
        %1831 = vmatpush1.msra.mxu0 0.0
        %1832 = vmatprep.subr.mxu0 0.0
        %1833 = vmatpush1.msra.mxu0 0.0
        %1834 = vmatprep.subr.mxu0 0.0
        %1835 = vmatpush1.msra.mxu0 0.0
        %1836 = vmatprep.subr.mxu0 0.0
        %1837 = vmatpush1.msra.mxu0 0.0
        %1838 = vmatprep.subr.mxu0 0.0
        %1839 = vmatpush1.msra.mxu0 0.0
        %1840 = vmatprep.subr.mxu0 0.0
        %v1841 = vand.u32 %v1608, 4294901760
        %v1842 = vsub.f32 %v1608, %v1841
        %1843 = vmatpush1.msra.mxu0 %v1842
        %1844 = vmatprep.subr.mxu0 0.0
        %1845 = vmatpush2.msra.mxu0 0.0
        %1846 = vmatprep.subr.mxu0 0.0
        %1847 = vmatpush2.msra.mxu0 0.0
        %1848 = vmatprep.subr.mxu0 0.0
        %1849 = vmatpush2.msra.mxu0 0.0
        %1850 = vmatprep.subr.mxu0 0.0
        %1851 = vmatpush2.msra.mxu0 0.0
        %1852 = vmatprep.subr.mxu0 0.0
        %1853 = vmatpush2.msra.mxu0 0.0
        %1854 = vmatprep.subr.mxu0 0.0
        %1855 = vmatpush2.msra.mxu0 0.0
        %1856 = vmatprep.subr.mxu0 0.0
        %1857 = vmatpush2.msra.mxu0 0.0
        %1858 = vmatprep.subr.mxu0 0.0
        %1859 = vmatpush2.msra.mxu0 0.0
        %1860 = vmatprep.subr.mxu0 0.0
        %1861 = vmatpush2.msra.mxu0 0.0
        %1862 = vmatprep.subr.mxu0 0.0
        %1863 = vmatpush2.msra.mxu0 0.0
        %1864 = vmatprep.subr.mxu0 0.0
        %1865 = vmatpush2.msra.mxu0 0.0
        %1866 = vmatprep.subr.mxu0 0.0
        %1867 = vmatpush2.msra.mxu0 0.0
        %1868 = vmatprep.subr.mxu0 0.0
        %1869 = vmatpush2.msra.mxu0 0.0
        %1870 = vmatprep.subr.mxu0 0.0
        %1871 = vmatpush2.msra.mxu0 0.0
        %1872 = vmatprep.subr.mxu0 0.0
        %1873 = vmatpush2.msra.mxu0 0.0
        %1874 = vmatprep.subr.mxu0 0.0
        %1875 = vmatpush2.msra.mxu0 0.0
        %1876 = vmatprep.mubr.f32.mxu0 0.0
        %v1877 = vand.u32 %v1595, 4294901760
        %v1878 = vsub.f32 %v1595, %v1877
        %1879 = vmatmul.mubr.f32.gmra.mxu0 %v1878
        %v1880 = vpop.f32.mrf.mxu0
        %v1881 = vadd.f32 %v1789, %v1880
        %v1882 = vpop.f32.mrf.mxu0
        %1883 = vmatprep.mubr.f32.mxu0 0.0
        %v1884 = vand.u32 %v1598, 4294901760
        %v1885 = vsub.f32 %v1598, %v1884
        %1886 = vmatmul.mubr.f32.gmra.mxu0 %v1885
        %v1887 = vpop.f32.mrf.mxu0
        %v1888 = vadd.f32 %v1795, %v1887
        %v1889 = vpop.f32.mrf.mxu0
        %1890 = vmatprep.mubr.f32.mxu0 0.0
        %v1891 = vand.u32 %v1601, 4294901760
        %v1892 = vsub.f32 %v1601, %v1891
        %1893 = vmatmul.mubr.f32.gmra.mxu0 %v1892
        %v1894 = vpop.f32.mrf.mxu0
        %v1895 = vadd.f32 %v1801, %v1894
        %v1896 = vpop.f32.mrf.mxu0
        %1897 = vmatprep.mubr.f32.mxu0 0.0
        %v1898 = vand.u32 %v1604, 4294901760
        %v1899 = vsub.f32 %v1604, %v1898
        %1900 = vmatmul.mubr.f32.gmra.mxu0 %v1899
        %v1901 = vpop.f32.mrf.mxu0
        %v1902 = vadd.f32 %v1807, %v1901
        %v1903 = vpop.f32.mrf.mxu0
        %1904 = vdwg.mxu0
        %1905 = vmatprep.subr.mxu0 0.0
        %1906 = vmatpush1.msra.mxu0 0.0
        %1907 = vmatprep.subr.mxu0 0.0
        %1908 = vmatpush1.msra.mxu0 0.0
        %1909 = vmatprep.subr.mxu0 0.0
        %1910 = vmatpush1.msra.mxu0 0.0
        %1911 = vmatprep.subr.mxu0 0.0
        %1912 = vmatpush1.msra.mxu0 0.0
        %1913 = vmatprep.subr.mxu0 0.0
        %1914 = vmatpush1.msra.mxu0 0.0
        %1915 = vmatprep.subr.mxu0 0.0
        %1916 = vmatpush1.msra.mxu0 0.0
        %1917 = vmatprep.subr.mxu0 0.0
        %1918 = vmatpush1.msra.mxu0 0.0
        %1919 = vmatprep.subr.mxu0 0.0
        %1920 = vmatpush1.msra.mxu0 0.0
        %1921 = vmatprep.subr.mxu0 0.0
        %1922 = vmatpush1.msra.mxu0 0.0
        %1923 = vmatprep.subr.mxu0 0.0
        %1924 = vmatpush1.msra.mxu0 0.0
        %1925 = vmatprep.subr.mxu0 0.0
        %1926 = vmatpush1.msra.mxu0 0.0
        %1927 = vmatprep.subr.mxu0 0.0
        %1928 = vmatpush1.msra.mxu0 0.0
        %1929 = vmatprep.subr.mxu0 0.0
        %1930 = vmatpush1.msra.mxu0 0.0
        %1931 = vmatprep.subr.mxu0 0.0
        %1932 = vmatpush1.msra.mxu0 0.0
        %1933 = vmatprep.subr.mxu0 0.0
        %1934 = vmatpush1.msra.mxu0 0.0
        %1935 = vmatprep.subr.mxu0 0.0
        %v1936 = vand.u32 %v1608, 4294901760
        %1937 = vmatpush1.msra.mxu0 %v1936
        %1938 = vmatprep.subr.mxu0 0.0
        %1939 = vmatpush2.msra.mxu0 0.0
        %1940 = vmatprep.subr.mxu0 0.0
        %1941 = vmatpush2.msra.mxu0 0.0
        %1942 = vmatprep.subr.mxu0 0.0
        %1943 = vmatpush2.msra.mxu0 0.0
        %1944 = vmatprep.subr.mxu0 0.0
        %1945 = vmatpush2.msra.mxu0 0.0
        %1946 = vmatprep.subr.mxu0 0.0
        %1947 = vmatpush2.msra.mxu0 0.0
        %1948 = vmatprep.subr.mxu0 0.0
        %1949 = vmatpush2.msra.mxu0 0.0
        %1950 = vmatprep.subr.mxu0 0.0
        %1951 = vmatpush2.msra.mxu0 0.0
        %1952 = vmatprep.subr.mxu0 0.0
        %1953 = vmatpush2.msra.mxu0 0.0
        %1954 = vmatprep.subr.mxu0 0.0
        %1955 = vmatpush2.msra.mxu0 0.0
        %1956 = vmatprep.subr.mxu0 0.0
        %1957 = vmatpush2.msra.mxu0 0.0
        %1958 = vmatprep.subr.mxu0 0.0
        %1959 = vmatpush2.msra.mxu0 0.0
        %1960 = vmatprep.subr.mxu0 0.0
        %1961 = vmatpush2.msra.mxu0 0.0
        %1962 = vmatprep.subr.mxu0 0.0
        %1963 = vmatpush2.msra.mxu0 0.0
        %1964 = vmatprep.subr.mxu0 0.0
        %1965 = vmatpush2.msra.mxu0 0.0
        %1966 = vmatprep.subr.mxu0 0.0
        %1967 = vmatpush2.msra.mxu0 0.0
        %1968 = vmatprep.subr.mxu0 0.0
        %1969 = vmatpush2.msra.mxu0 0.0
        %1970 = vmatprep.mubr.f32.mxu0 0.0
        %v1971 = vand.u32 %v1595, 4294901760
        %v1972 = vsub.f32 %v1595, %v1971
        %v1973 = vand.u32 %v1972, 4294901760
        %1974 = vmatmul.mubr.f32.gmra.mxu0 %v1973
        %v1975 = vpop.f32.mrf.mxu0
        %v1976 = vadd.f32 %v1881, %v1975
        %v1977 = vpop.f32.mrf.mxu0
        %1978 = vmatprep.mubr.f32.mxu0 0.0
        %v1979 = vand.u32 %v1598, 4294901760
        %v1980 = vsub.f32 %v1598, %v1979
        %v1981 = vand.u32 %v1980, 4294901760
        %1982 = vmatmul.mubr.f32.gmra.mxu0 %v1981
        %v1983 = vpop.f32.mrf.mxu0
        %v1984 = vadd.f32 %v1888, %v1983
        %v1985 = vpop.f32.mrf.mxu0
        %1986 = vmatprep.mubr.f32.mxu0 0.0
        %v1987 = vand.u32 %v1601, 4294901760
        %v1988 = vsub.f32 %v1601, %v1987
        %v1989 = vand.u32 %v1988, 4294901760
        %1990 = vmatmul.mubr.f32.gmra.mxu0 %v1989
        %v1991 = vpop.f32.mrf.mxu0
        %v1992 = vadd.f32 %v1895, %v1991
        %v1993 = vpop.f32.mrf.mxu0
        %1994 = vmatprep.mubr.f32.mxu0 0.0
        %v1995 = vand.u32 %v1604, 4294901760
        %v1996 = vsub.f32 %v1604, %v1995
        %v1997 = vand.u32 %v1996, 4294901760
        %1998 = vmatmul.mubr.f32.gmra.mxu0 %v1997
        %v1999 = vpop.f32.mrf.mxu0
        %v2000 = vadd.f32 %v1902, %v1999
        %v2001 = vpop.f32.mrf.mxu0
        %2002 = vdwg.mxu0
        %2003 = vmatprep.subr.mxu0 0.0
        %2004 = vmatpush1.msra.mxu0 0.0
        %2005 = vmatprep.subr.mxu0 0.0
        %2006 = vmatpush1.msra.mxu0 0.0
        %2007 = vmatprep.subr.mxu0 0.0
        %2008 = vmatpush1.msra.mxu0 0.0
        %2009 = vmatprep.subr.mxu0 0.0
        %2010 = vmatpush1.msra.mxu0 0.0
        %2011 = vmatprep.subr.mxu0 0.0
        %2012 = vmatpush1.msra.mxu0 0.0
        %2013 = vmatprep.subr.mxu0 0.0
        %2014 = vmatpush1.msra.mxu0 0.0
        %2015 = vmatprep.subr.mxu0 0.0
        %2016 = vmatpush1.msra.mxu0 0.0
        %2017 = vmatprep.subr.mxu0 0.0
        %2018 = vmatpush1.msra.mxu0 0.0
        %2019 = vmatprep.subr.mxu0 0.0
        %2020 = vmatpush1.msra.mxu0 0.0
        %2021 = vmatprep.subr.mxu0 0.0
        %2022 = vmatpush1.msra.mxu0 0.0
        %2023 = vmatprep.subr.mxu0 0.0
        %2024 = vmatpush1.msra.mxu0 0.0
        %2025 = vmatprep.subr.mxu0 0.0
        %2026 = vmatpush1.msra.mxu0 0.0
        %2027 = vmatprep.subr.mxu0 0.0
        %2028 = vmatpush1.msra.mxu0 0.0
        %2029 = vmatprep.subr.mxu0 0.0
        %2030 = vmatpush1.msra.mxu0 0.0
        %2031 = vmatprep.subr.mxu0 0.0
        %2032 = vmatpush1.msra.mxu0 0.0
        %2033 = vmatprep.subr.mxu0 0.0
        %v2034 = vand.u32 %v1608, 4294901760
        %v2035 = vsub.f32 %v1608, %v2034
        %v2036 = vand.u32 %v2035, 4294901760
        %2037 = vmatpush1.msra.mxu0 %v2036
        %2038 = vmatprep.subr.mxu0 0.0
        %2039 = vmatpush2.msra.mxu0 0.0
        %2040 = vmatprep.subr.mxu0 0.0
        %2041 = vmatpush2.msra.mxu0 0.0
        %2042 = vmatprep.subr.mxu0 0.0
        %2043 = vmatpush2.msra.mxu0 0.0
        %2044 = vmatprep.subr.mxu0 0.0
        %2045 = vmatpush2.msra.mxu0 0.0
        %2046 = vmatprep.subr.mxu0 0.0
        %2047 = vmatpush2.msra.mxu0 0.0
        %2048 = vmatprep.subr.mxu0 0.0
        %2049 = vmatpush2.msra.mxu0 0.0
        %2050 = vmatprep.subr.mxu0 0.0
        %2051 = vmatpush2.msra.mxu0 0.0
        %2052 = vmatprep.subr.mxu0 0.0
        %2053 = vmatpush2.msra.mxu0 0.0
        %2054 = vmatprep.subr.mxu0 0.0
        %2055 = vmatpush2.msra.mxu0 0.0
        %2056 = vmatprep.subr.mxu0 0.0
        %2057 = vmatpush2.msra.mxu0 0.0
        %2058 = vmatprep.subr.mxu0 0.0
        %2059 = vmatpush2.msra.mxu0 0.0
        %2060 = vmatprep.subr.mxu0 0.0
        %2061 = vmatpush2.msra.mxu0 0.0
        %2062 = vmatprep.subr.mxu0 0.0
        %2063 = vmatpush2.msra.mxu0 0.0
        %2064 = vmatprep.subr.mxu0 0.0
        %2065 = vmatpush2.msra.mxu0 0.0
        %2066 = vmatprep.subr.mxu0 0.0
        %2067 = vmatpush2.msra.mxu0 0.0
        %2068 = vmatprep.subr.mxu0 0.0
        %2069 = vmatpush2.msra.mxu0 0.0
        %2070 = vmatprep.mubr.f32.mxu0 0.0
        %v2071 = vand.u32 %v1595, 4294901760
        %2072 = vmatmul.mubr.f32.gmra.mxu0 %v2071
        %v2073 = vpop.f32.mrf.mxu0
        %v2074 = vadd.f32 %v1976, %v2073
        %v2075 = vpop.f32.mrf.mxu0
        %2076 = vmatprep.mubr.f32.mxu0 0.0
        %v2077 = vand.u32 %v1598, 4294901760
        %2078 = vmatmul.mubr.f32.gmra.mxu0 %v2077
        %v2079 = vpop.f32.mrf.mxu0
        %v2080 = vadd.f32 %v1984, %v2079
        %v2081 = vpop.f32.mrf.mxu0
        %2082 = vmatprep.mubr.f32.mxu0 0.0
        %v2083 = vand.u32 %v1601, 4294901760
        %2084 = vmatmul.mubr.f32.gmra.mxu0 %v2083
        %v2085 = vpop.f32.mrf.mxu0
        %v2086 = vadd.f32 %v1992, %v2085
        %v2087 = vpop.f32.mrf.mxu0
        %2088 = vmatprep.mubr.f32.mxu0 0.0
        %v2089 = vand.u32 %v1604, 4294901760
        %2090 = vmatmul.mubr.f32.gmra.mxu0 %v2089
        %v2091 = vpop.f32.mrf.mxu0
        %v2092 = vadd.f32 %v2000, %v2091
        %v2093 = vpop.f32.mrf.mxu0
        %2094 = vdwg.mxu0
        %2095 = vmatprep.subr.mxu0 0.0
        %2096 = vmatpush1.msra.mxu0 0.0
        %2097 = vmatprep.subr.mxu0 0.0
        %2098 = vmatpush1.msra.mxu0 0.0
        %2099 = vmatprep.subr.mxu0 0.0
        %2100 = vmatpush1.msra.mxu0 0.0
        %2101 = vmatprep.subr.mxu0 0.0
        %2102 = vmatpush1.msra.mxu0 0.0
        %2103 = vmatprep.subr.mxu0 0.0
        %2104 = vmatpush1.msra.mxu0 0.0
        %2105 = vmatprep.subr.mxu0 0.0
        %2106 = vmatpush1.msra.mxu0 0.0
        %2107 = vmatprep.subr.mxu0 0.0
        %2108 = vmatpush1.msra.mxu0 0.0
        %2109 = vmatprep.subr.mxu0 0.0
        %2110 = vmatpush1.msra.mxu0 0.0
        %2111 = vmatprep.subr.mxu0 0.0
        %2112 = vmatpush1.msra.mxu0 0.0
        %2113 = vmatprep.subr.mxu0 0.0
        %2114 = vmatpush1.msra.mxu0 0.0
        %2115 = vmatprep.subr.mxu0 0.0
        %2116 = vmatpush1.msra.mxu0 0.0
        %2117 = vmatprep.subr.mxu0 0.0
        %2118 = vmatpush1.msra.mxu0 0.0
        %2119 = vmatprep.subr.mxu0 0.0
        %2120 = vmatpush1.msra.mxu0 0.0
        %2121 = vmatprep.subr.mxu0 0.0
        %2122 = vmatpush1.msra.mxu0 0.0
        %2123 = vmatprep.subr.mxu0 0.0
        %2124 = vmatpush1.msra.mxu0 0.0
        %2125 = vmatprep.subr.mxu0 0.0
        %v2126 = vand.u32 %v1608, 4294901760
        %2127 = vmatpush1.msra.mxu0 %v2126
        %2128 = vmatprep.subr.mxu0 0.0
        %2129 = vmatpush2.msra.mxu0 0.0
        %2130 = vmatprep.subr.mxu0 0.0
        %2131 = vmatpush2.msra.mxu0 0.0
        %2132 = vmatprep.subr.mxu0 0.0
        %2133 = vmatpush2.msra.mxu0 0.0
        %2134 = vmatprep.subr.mxu0 0.0
        %2135 = vmatpush2.msra.mxu0 0.0
        %2136 = vmatprep.subr.mxu0 0.0
        %2137 = vmatpush2.msra.mxu0 0.0
        %2138 = vmatprep.subr.mxu0 0.0
        %2139 = vmatpush2.msra.mxu0 0.0
        %2140 = vmatprep.subr.mxu0 0.0
        %2141 = vmatpush2.msra.mxu0 0.0
        %2142 = vmatprep.subr.mxu0 0.0
        %2143 = vmatpush2.msra.mxu0 0.0
        %2144 = vmatprep.subr.mxu0 0.0
        %2145 = vmatpush2.msra.mxu0 0.0
        %2146 = vmatprep.subr.mxu0 0.0
        %2147 = vmatpush2.msra.mxu0 0.0
        %2148 = vmatprep.subr.mxu0 0.0
        %2149 = vmatpush2.msra.mxu0 0.0
        %2150 = vmatprep.subr.mxu0 0.0
        %2151 = vmatpush2.msra.mxu0 0.0
        %2152 = vmatprep.subr.mxu0 0.0
        %2153 = vmatpush2.msra.mxu0 0.0
        %2154 = vmatprep.subr.mxu0 0.0
        %2155 = vmatpush2.msra.mxu0 0.0
        %2156 = vmatprep.subr.mxu0 0.0
        %2157 = vmatpush2.msra.mxu0 0.0
        %2158 = vmatprep.subr.mxu0 0.0
        %2159 = vmatpush2.msra.mxu0 0.0
        %2160 = vmatprep.mubr.f32.mxu0 0.0
        %v2161 = vand.u32 %v1595, 4294901760
        %2162 = vmatmul.mubr.f32.gmra.mxu0 %v2161
        %v2163 = vpop.f32.mrf.mxu0
        %v2164 = vadd.f32 %v2074, %v2163
        %v2165 = vpop.f32.mrf.mxu0
        %2166 = vmatprep.mubr.f32.mxu0 0.0
        %v2167 = vand.u32 %v1598, 4294901760
        %2168 = vmatmul.mubr.f32.gmra.mxu0 %v2167
        %v2169 = vpop.f32.mrf.mxu0
        %v2170 = vadd.f32 %v2080, %v2169
        %v2171 = vpop.f32.mrf.mxu0
        %2172 = vmatprep.mubr.f32.mxu0 0.0
        %v2173 = vand.u32 %v1601, 4294901760
        %2174 = vmatmul.mubr.f32.gmra.mxu0 %v2173
        %v2175 = vpop.f32.mrf.mxu0
        %v2176 = vadd.f32 %v2086, %v2175
        %v2177 = vpop.f32.mrf.mxu0
        %2178 = vmatprep.mubr.f32.mxu0 0.0
        %v2179 = vand.u32 %v1604, 4294901760
        %2180 = vmatmul.mubr.f32.gmra.mxu0 %v2179
        %v2181 = vpop.f32.mrf.mxu0
        %v2182 = vadd.f32 %v2092, %v2181
        %v2183 = vpop.f32.mrf.mxu0
        %2184 = vdwg.mxu0
        %v2185 = vxor.u32 %v2164, 2147483648
        %v2186 = vxor.u32 %v2170, 2147483648
        %v2187 = vxor.u32 %v2176, 2147483648
        %v2188 = vxor.u32 %v2182, 2147483648
        %v2189 = vmul.f32 %v2185, 1.442695
        %v2190 = vpow.pop %v2189
        %v2191 = vmul.f32 %v2186, 1.442695
        %v2192 = vpow.pop %v2191
        %v2193 = vmul.f32 %v2187, 1.442695
        %v2194 = vpow.pop %v2193
        %v2195 = vmul.f32 %v2188, 1.442695
        %v2196 = vpow.pop %v2195
        %v2197 = vadd.f32 %v2190, 1.0
        %v2198 = vadd.f32 %v2192, 1.0
        %v2199 = vadd.f32 %v2194, 1.0
        %v2200 = vadd.f32 %v2196, 1.0
        %v2201 = vrcp.pop %v2197
        %v2202 = vmul.f32 1.0, %v2201
        %v2203 = vrcp.pop %v2198
        %v2204 = vmul.f32 1.0, %v2203
        %v2205 = vrcp.pop %v2199
        %v2206 = vmul.f32 1.0, %v2205
        %v2207 = vrcp.pop %v2200
        %v2208 = vmul.f32 1.0, %v2207
        %vm2209 = vcmask 64512
        %v2211 = vsel %vm2209, %v2202, 0
        %v2214 = vsel %vm2209, %v2204, 0
        %v2217 = vsel %vm2209, %v2206, 0
        %v2220 = vsel %vm2209, %v2208, 0
        %2222 = vmatprep.subr.mxu0 0.0
        %2223 = vmatpush1.msra.mxu0 0.0
        %2224 = vmatprep.subr.mxu0 0.0
        %2225 = vmatpush1.msra.mxu0 0.0
        %2226 = vmatprep.subr.mxu0 0.0
        %2227 = vmatpush1.msra.mxu0 0.0
        %2228 = vmatprep.subr.mxu0 0.0
        %2229 = vmatpush1.msra.mxu0 0.0
        %2230 = vmatprep.subr.mxu0 0.0
        %2231 = vmatpush1.msra.mxu0 0.0
        %2232 = vmatprep.subr.mxu0 0.0
        %2233 = vmatpush1.msra.mxu0 0.0
        %2234 = vmatprep.subr.mxu0 0.0
        %2235 = vmatpush1.msra.mxu0 0.0
        %2236 = vmatprep.subr.mxu0 0.0
        %2237 = vmatpush1.msra.mxu0 0.0
        %2238 = vmatprep.subr.mxu0 0.0
        %2239 = vmatpush1.msra.mxu0 0.0
        %2240 = vmatprep.subr.mxu0 0.0
        %2241 = vmatpush1.msra.mxu0 0.0
        %2242 = vmatprep.subr.mxu0 0.0
        %2243 = vmatpush1.msra.mxu0 0.0
        %2244 = vmatprep.subr.mxu0 0.0
        %2245 = vmatpush1.msra.mxu0 0.0
        %2246 = vmatprep.subr.mxu0 0.0
        %2247 = vmatpush1.msra.mxu0 0.0
        %2248 = vmatprep.subr.mxu0 0.0
        %2249 = vmatpush1.msra.mxu0 0.0
        %2250 = vmatprep.subr.mxu0 0.0
        %2251 = vmatpush1.msra.mxu0 0.0
        %2252 = vmatprep.subr.mxu0 0.0
        %v2253 = vand.u32 %v303, 4294901760
        %2254 = vmatpush1.msra.mxu0 %v2253
        %2255 = vmatprep.subr.mxu0 0.0
        %2256 = vmatpush2.msra.mxu0 0.0
        %2257 = vmatprep.subr.mxu0 0.0
        %2258 = vmatpush2.msra.mxu0 0.0
        %2259 = vmatprep.subr.mxu0 0.0
        %2260 = vmatpush2.msra.mxu0 0.0
        %2261 = vmatprep.subr.mxu0 0.0
        %2262 = vmatpush2.msra.mxu0 0.0
        %2263 = vmatprep.subr.mxu0 0.0
        %2264 = vmatpush2.msra.mxu0 0.0
        %2265 = vmatprep.subr.mxu0 0.0
        %2266 = vmatpush2.msra.mxu0 0.0
        %2267 = vmatprep.subr.mxu0 0.0
        %2268 = vmatpush2.msra.mxu0 0.0
        %2269 = vmatprep.subr.mxu0 0.0
        %2270 = vmatpush2.msra.mxu0 0.0
        %2271 = vmatprep.subr.mxu0 0.0
        %2272 = vmatpush2.msra.mxu0 0.0
        %2273 = vmatprep.subr.mxu0 0.0
        %2274 = vmatpush2.msra.mxu0 0.0
        %2275 = vmatprep.subr.mxu0 0.0
        %2276 = vmatpush2.msra.mxu0 0.0
        %2277 = vmatprep.subr.mxu0 0.0
        %2278 = vmatpush2.msra.mxu0 0.0
        %2279 = vmatprep.subr.mxu0 0.0
        %2280 = vmatpush2.msra.mxu0 0.0
        %2281 = vmatprep.subr.mxu0 0.0
        %2282 = vmatpush2.msra.mxu0 0.0
        %2283 = vmatprep.subr.mxu0 0.0
        %2284 = vmatpush2.msra.mxu0 0.0
        %2285 = vmatprep.subr.mxu0 0.0
        %2286 = vmatpush2.msra.mxu0 0.0
        %2287 = vmatprep.mubr.f32.mxu0 0.0
        %v2288 = vand.u32 %v2211, 4294901760
        %v2289 = vsub.f32 %v2211, %v2288
        %v2290 = vand.u32 %v2289, 4294901760
        %v2291 = vsub.f32 %v2289, %v2290
        %v2292 = vand.u32 %v2291, 4294901760
        %2293 = vmatmul.mubr.f32.gmra.mxu0 %v2292
        %v2294 = vpop.f32.mrf.mxu0
        %v2295 = vadd.f32 1.0, %v2294
        %v2296 = vpop.f32.mrf.mxu0
        %2297 = vmatprep.mubr.f32.mxu0 0.0
        %v2298 = vand.u32 %v2214, 4294901760
        %v2299 = vsub.f32 %v2214, %v2298
        %v2300 = vand.u32 %v2299, 4294901760
        %v2301 = vsub.f32 %v2299, %v2300
        %v2302 = vand.u32 %v2301, 4294901760
        %2303 = vmatmul.mubr.f32.gmra.mxu0 %v2302
        %v2304 = vpop.f32.mrf.mxu0
        %v2305 = vadd.f32 1.0, %v2304
        %v2306 = vpop.f32.mrf.mxu0
        %2307 = vmatprep.mubr.f32.mxu0 0.0
        %v2308 = vand.u32 %v2217, 4294901760
        %v2309 = vsub.f32 %v2217, %v2308
        %v2310 = vand.u32 %v2309, 4294901760
        %v2311 = vsub.f32 %v2309, %v2310
        %v2312 = vand.u32 %v2311, 4294901760
        %2313 = vmatmul.mubr.f32.gmra.mxu0 %v2312
        %v2314 = vpop.f32.mrf.mxu0
        %v2315 = vadd.f32 1.0, %v2314
        %v2316 = vpop.f32.mrf.mxu0
        %2317 = vmatprep.mubr.f32.mxu0 0.0
        %v2318 = vand.u32 %v2220, 4294901760
        %v2319 = vsub.f32 %v2220, %v2318
        %v2320 = vand.u32 %v2319, 4294901760
        %v2321 = vsub.f32 %v2319, %v2320
        %v2322 = vand.u32 %v2321, 4294901760
        %2323 = vmatmul.mubr.f32.gmra.mxu0 %v2322
        %v2324 = vpop.f32.mrf.mxu0
        %v2325 = vadd.f32 1.0, %v2324
        %v2326 = vpop.f32.mrf.mxu0
        %2327 = vdwg.mxu0
        %2328 = vmatprep.subr.mxu0 0.0
        %2329 = vmatpush1.msra.mxu0 0.0
        %2330 = vmatprep.subr.mxu0 0.0
        %2331 = vmatpush1.msra.mxu0 0.0
        %2332 = vmatprep.subr.mxu0 0.0
        %2333 = vmatpush1.msra.mxu0 0.0
        %2334 = vmatprep.subr.mxu0 0.0
        %2335 = vmatpush1.msra.mxu0 0.0
        %2336 = vmatprep.subr.mxu0 0.0
        %2337 = vmatpush1.msra.mxu0 0.0
        %2338 = vmatprep.subr.mxu0 0.0
        %2339 = vmatpush1.msra.mxu0 0.0
        %2340 = vmatprep.subr.mxu0 0.0
        %2341 = vmatpush1.msra.mxu0 0.0
        %2342 = vmatprep.subr.mxu0 0.0
        %2343 = vmatpush1.msra.mxu0 0.0
        %2344 = vmatprep.subr.mxu0 0.0
        %2345 = vmatpush1.msra.mxu0 0.0
        %2346 = vmatprep.subr.mxu0 0.0
        %2347 = vmatpush1.msra.mxu0 0.0
        %2348 = vmatprep.subr.mxu0 0.0
        %2349 = vmatpush1.msra.mxu0 0.0
        %2350 = vmatprep.subr.mxu0 0.0
        %2351 = vmatpush1.msra.mxu0 0.0
        %2352 = vmatprep.subr.mxu0 0.0
        %2353 = vmatpush1.msra.mxu0 0.0
        %2354 = vmatprep.subr.mxu0 0.0
        %2355 = vmatpush1.msra.mxu0 0.0
        %2356 = vmatprep.subr.mxu0 0.0
        %2357 = vmatpush1.msra.mxu0 0.0
        %2358 = vmatprep.subr.mxu0 0.0
        %v2359 = vand.u32 %v303, 4294901760
        %v2360 = vsub.f32 %v303, %v2359
        %v2361 = vand.u32 %v2360, 4294901760
        %v2362 = vsub.f32 %v2360, %v2361
        %v2363 = vand.u32 %v2362, 4294901760
        %2364 = vmatpush1.msra.mxu0 %v2363
        %2365 = vmatprep.subr.mxu0 0.0
        %2366 = vmatpush2.msra.mxu0 0.0
        %2367 = vmatprep.subr.mxu0 0.0
        %2368 = vmatpush2.msra.mxu0 0.0
        %2369 = vmatprep.subr.mxu0 0.0
        %2370 = vmatpush2.msra.mxu0 0.0
        %2371 = vmatprep.subr.mxu0 0.0
        %2372 = vmatpush2.msra.mxu0 0.0
        %2373 = vmatprep.subr.mxu0 0.0
        %2374 = vmatpush2.msra.mxu0 0.0
        %2375 = vmatprep.subr.mxu0 0.0
        %2376 = vmatpush2.msra.mxu0 0.0
        %2377 = vmatprep.subr.mxu0 0.0
        %2378 = vmatpush2.msra.mxu0 0.0
        %2379 = vmatprep.subr.mxu0 0.0
        %2380 = vmatpush2.msra.mxu0 0.0
        %2381 = vmatprep.subr.mxu0 0.0
        %2382 = vmatpush2.msra.mxu0 0.0
        %2383 = vmatprep.subr.mxu0 0.0
        %2384 = vmatpush2.msra.mxu0 0.0
        %2385 = vmatprep.subr.mxu0 0.0
        %2386 = vmatpush2.msra.mxu0 0.0
        %2387 = vmatprep.subr.mxu0 0.0
        %2388 = vmatpush2.msra.mxu0 0.0
        %2389 = vmatprep.subr.mxu0 0.0
        %2390 = vmatpush2.msra.mxu0 0.0
        %2391 = vmatprep.subr.mxu0 0.0
        %2392 = vmatpush2.msra.mxu0 0.0
        %2393 = vmatprep.subr.mxu0 0.0
        %2394 = vmatpush2.msra.mxu0 0.0
        %2395 = vmatprep.subr.mxu0 0.0
        %2396 = vmatpush2.msra.mxu0 0.0
        %2397 = vmatprep.mubr.f32.mxu0 0.0
        %v2398 = vand.u32 %v2211, 4294901760
        %2399 = vmatmul.mubr.f32.gmra.mxu0 %v2398
        %v2400 = vpop.f32.mrf.mxu0
        %v2401 = vadd.f32 %v2295, %v2400
        %v2402 = vpop.f32.mrf.mxu0
        %2403 = vmatprep.mubr.f32.mxu0 0.0
        %v2404 = vand.u32 %v2214, 4294901760
        %2405 = vmatmul.mubr.f32.gmra.mxu0 %v2404
        %v2406 = vpop.f32.mrf.mxu0
        %v2407 = vadd.f32 %v2305, %v2406
        %v2408 = vpop.f32.mrf.mxu0
        %2409 = vmatprep.mubr.f32.mxu0 0.0
        %v2410 = vand.u32 %v2217, 4294901760
        %2411 = vmatmul.mubr.f32.gmra.mxu0 %v2410
        %v2412 = vpop.f32.mrf.mxu0
        %v2413 = vadd.f32 %v2315, %v2412
        %v2414 = vpop.f32.mrf.mxu0
        %2415 = vmatprep.mubr.f32.mxu0 0.0
        %v2416 = vand.u32 %v2220, 4294901760
        %2417 = vmatmul.mubr.f32.gmra.mxu0 %v2416
        %v2418 = vpop.f32.mrf.mxu0
        %v2419 = vadd.f32 %v2325, %v2418
        %v2420 = vpop.f32.mrf.mxu0
        %2421 = vdwg.mxu0
        %2422 = vmatprep.subr.mxu0 0.0
        %2423 = vmatpush1.msra.mxu0 0.0
        %2424 = vmatprep.subr.mxu0 0.0
        %2425 = vmatpush1.msra.mxu0 0.0
        %2426 = vmatprep.subr.mxu0 0.0
        %2427 = vmatpush1.msra.mxu0 0.0
        %2428 = vmatprep.subr.mxu0 0.0
        %2429 = vmatpush1.msra.mxu0 0.0
        %2430 = vmatprep.subr.mxu0 0.0
        %2431 = vmatpush1.msra.mxu0 0.0
        %2432 = vmatprep.subr.mxu0 0.0
        %2433 = vmatpush1.msra.mxu0 0.0
        %2434 = vmatprep.subr.mxu0 0.0
        %2435 = vmatpush1.msra.mxu0 0.0
        %2436 = vmatprep.subr.mxu0 0.0
        %2437 = vmatpush1.msra.mxu0 0.0
        %2438 = vmatprep.subr.mxu0 0.0
        %2439 = vmatpush1.msra.mxu0 0.0
        %2440 = vmatprep.subr.mxu0 0.0
        %2441 = vmatpush1.msra.mxu0 0.0
        %2442 = vmatprep.subr.mxu0 0.0
        %2443 = vmatpush1.msra.mxu0 0.0
        %2444 = vmatprep.subr.mxu0 0.0
        %2445 = vmatpush1.msra.mxu0 0.0
        %2446 = vmatprep.subr.mxu0 0.0
        %2447 = vmatpush1.msra.mxu0 0.0
        %2448 = vmatprep.subr.mxu0 0.0
        %2449 = vmatpush1.msra.mxu0 0.0
        %2450 = vmatprep.subr.mxu0 0.0
        %2451 = vmatpush1.msra.mxu0 0.0
        %2452 = vmatprep.subr.mxu0 0.0
        %v2453 = vand.u32 %v303, 4294901760
        %v2454 = vsub.f32 %v303, %v2453
        %2455 = vmatpush1.msra.mxu0 %v2454
        %2456 = vmatprep.subr.mxu0 0.0
        %2457 = vmatpush2.msra.mxu0 0.0
        %2458 = vmatprep.subr.mxu0 0.0
        %2459 = vmatpush2.msra.mxu0 0.0
        %2460 = vmatprep.subr.mxu0 0.0
        %2461 = vmatpush2.msra.mxu0 0.0
        %2462 = vmatprep.subr.mxu0 0.0
        %2463 = vmatpush2.msra.mxu0 0.0
        %2464 = vmatprep.subr.mxu0 0.0
        %2465 = vmatpush2.msra.mxu0 0.0
        %2466 = vmatprep.subr.mxu0 0.0
        %2467 = vmatpush2.msra.mxu0 0.0
        %2468 = vmatprep.subr.mxu0 0.0
        %2469 = vmatpush2.msra.mxu0 0.0
        %2470 = vmatprep.subr.mxu0 0.0
        %2471 = vmatpush2.msra.mxu0 0.0
        %2472 = vmatprep.subr.mxu0 0.0
        %2473 = vmatpush2.msra.mxu0 0.0
        %2474 = vmatprep.subr.mxu0 0.0
        %2475 = vmatpush2.msra.mxu0 0.0
        %2476 = vmatprep.subr.mxu0 0.0
        %2477 = vmatpush2.msra.mxu0 0.0
        %2478 = vmatprep.subr.mxu0 0.0
        %2479 = vmatpush2.msra.mxu0 0.0
        %2480 = vmatprep.subr.mxu0 0.0
        %2481 = vmatpush2.msra.mxu0 0.0
        %2482 = vmatprep.subr.mxu0 0.0
        %2483 = vmatpush2.msra.mxu0 0.0
        %2484 = vmatprep.subr.mxu0 0.0
        %2485 = vmatpush2.msra.mxu0 0.0
        %2486 = vmatprep.subr.mxu0 0.0
        %2487 = vmatpush2.msra.mxu0 0.0
        %2488 = vmatprep.mubr.f32.mxu0 0.0
        %v2489 = vand.u32 %v2211, 4294901760
        %v2490 = vsub.f32 %v2211, %v2489
        %2491 = vmatmul.mubr.f32.gmra.mxu0 %v2490
        %v2492 = vpop.f32.mrf.mxu0
        %v2493 = vadd.f32 %v2401, %v2492
        %v2494 = vpop.f32.mrf.mxu0
        %2495 = vmatprep.mubr.f32.mxu0 0.0
        %v2496 = vand.u32 %v2214, 4294901760
        %v2497 = vsub.f32 %v2214, %v2496
        %2498 = vmatmul.mubr.f32.gmra.mxu0 %v2497
        %v2499 = vpop.f32.mrf.mxu0
        %v2500 = vadd.f32 %v2407, %v2499
        %v2501 = vpop.f32.mrf.mxu0
        %2502 = vmatprep.mubr.f32.mxu0 0.0
        %v2503 = vand.u32 %v2217, 4294901760
        %v2504 = vsub.f32 %v2217, %v2503
        %2505 = vmatmul.mubr.f32.gmra.mxu0 %v2504
        %v2506 = vpop.f32.mrf.mxu0
        %v2507 = vadd.f32 %v2413, %v2506
        %v2508 = vpop.f32.mrf.mxu0
        %2509 = vmatprep.mubr.f32.mxu0 0.0
        %v2510 = vand.u32 %v2220, 4294901760
        %v2511 = vsub.f32 %v2220, %v2510
        %2512 = vmatmul.mubr.f32.gmra.mxu0 %v2511
        %v2513 = vpop.f32.mrf.mxu0
        %v2514 = vadd.f32 %v2419, %v2513
        %v2515 = vpop.f32.mrf.mxu0
        %2516 = vdwg.mxu0
        %2517 = vmatprep.subr.mxu0 0.0
        %2518 = vmatpush1.msra.mxu0 0.0
        %2519 = vmatprep.subr.mxu0 0.0
        %2520 = vmatpush1.msra.mxu0 0.0
        %2521 = vmatprep.subr.mxu0 0.0
        %2522 = vmatpush1.msra.mxu0 0.0
        %2523 = vmatprep.subr.mxu0 0.0
        %2524 = vmatpush1.msra.mxu0 0.0
        %2525 = vmatprep.subr.mxu0 0.0
        %2526 = vmatpush1.msra.mxu0 0.0
        %2527 = vmatprep.subr.mxu0 0.0
        %2528 = vmatpush1.msra.mxu0 0.0
        %2529 = vmatprep.subr.mxu0 0.0
        %2530 = vmatpush1.msra.mxu0 0.0
        %2531 = vmatprep.subr.mxu0 0.0
        %2532 = vmatpush1.msra.mxu0 0.0
        %2533 = vmatprep.subr.mxu0 0.0
        %2534 = vmatpush1.msra.mxu0 0.0
        %2535 = vmatprep.subr.mxu0 0.0
        %2536 = vmatpush1.msra.mxu0 0.0
        %2537 = vmatprep.subr.mxu0 0.0
        %2538 = vmatpush1.msra.mxu0 0.0
        %2539 = vmatprep.subr.mxu0 0.0
        %2540 = vmatpush1.msra.mxu0 0.0
        %2541 = vmatprep.subr.mxu0 0.0
        %2542 = vmatpush1.msra.mxu0 0.0
        %2543 = vmatprep.subr.mxu0 0.0
        %2544 = vmatpush1.msra.mxu0 0.0
        %2545 = vmatprep.subr.mxu0 0.0
        %2546 = vmatpush1.msra.mxu0 0.0
        %2547 = vmatprep.subr.mxu0 0.0
        %v2548 = vand.u32 %v303, 4294901760
        %2549 = vmatpush1.msra.mxu0 %v2548
        %2550 = vmatprep.subr.mxu0 0.0
        %2551 = vmatpush2.msra.mxu0 0.0
        %2552 = vmatprep.subr.mxu0 0.0
        %2553 = vmatpush2.msra.mxu0 0.0
        %2554 = vmatprep.subr.mxu0 0.0
        %2555 = vmatpush2.msra.mxu0 0.0
        %2556 = vmatprep.subr.mxu0 0.0
        %2557 = vmatpush2.msra.mxu0 0.0
        %2558 = vmatprep.subr.mxu0 0.0
        %2559 = vmatpush2.msra.mxu0 0.0
        %2560 = vmatprep.subr.mxu0 0.0
        %2561 = vmatpush2.msra.mxu0 0.0
        %2562 = vmatprep.subr.mxu0 0.0
        %2563 = vmatpush2.msra.mxu0 0.0
        %2564 = vmatprep.subr.mxu0 0.0
        %2565 = vmatpush2.msra.mxu0 0.0
        %2566 = vmatprep.subr.mxu0 0.0
        %2567 = vmatpush2.msra.mxu0 0.0
        %2568 = vmatprep.subr.mxu0 0.0
        %2569 = vmatpush2.msra.mxu0 0.0
        %2570 = vmatprep.subr.mxu0 0.0
        %2571 = vmatpush2.msra.mxu0 0.0
        %2572 = vmatprep.subr.mxu0 0.0
        %2573 = vmatpush2.msra.mxu0 0.0
        %2574 = vmatprep.subr.mxu0 0.0
        %2575 = vmatpush2.msra.mxu0 0.0
        %2576 = vmatprep.subr.mxu0 0.0
        %2577 = vmatpush2.msra.mxu0 0.0
        %2578 = vmatprep.subr.mxu0 0.0
        %2579 = vmatpush2.msra.mxu0 0.0
        %2580 = vmatprep.subr.mxu0 0.0
        %2581 = vmatpush2.msra.mxu0 0.0
        %2582 = vmatprep.mubr.f32.mxu0 0.0
        %v2583 = vand.u32 %v2211, 4294901760
        %v2584 = vsub.f32 %v2211, %v2583
        %v2585 = vand.u32 %v2584, 4294901760
        %2586 = vmatmul.mubr.f32.gmra.mxu0 %v2585
        %v2587 = vpop.f32.mrf.mxu0
        %v2588 = vadd.f32 %v2493, %v2587
        %v2589 = vpop.f32.mrf.mxu0
        %2590 = vmatprep.mubr.f32.mxu0 0.0
        %v2591 = vand.u32 %v2214, 4294901760
        %v2592 = vsub.f32 %v2214, %v2591
        %v2593 = vand.u32 %v2592, 4294901760
        %2594 = vmatmul.mubr.f32.gmra.mxu0 %v2593
        %v2595 = vpop.f32.mrf.mxu0
        %v2596 = vadd.f32 %v2500, %v2595
        %v2597 = vpop.f32.mrf.mxu0
        %2598 = vmatprep.mubr.f32.mxu0 0.0
        %v2599 = vand.u32 %v2217, 4294901760
        %v2600 = vsub.f32 %v2217, %v2599
        %v2601 = vand.u32 %v2600, 4294901760
        %2602 = vmatmul.mubr.f32.gmra.mxu0 %v2601
        %v2603 = vpop.f32.mrf.mxu0
        %v2604 = vadd.f32 %v2507, %v2603
        %v2605 = vpop.f32.mrf.mxu0
        %2606 = vmatprep.mubr.f32.mxu0 0.0
        %v2607 = vand.u32 %v2220, 4294901760
        %v2608 = vsub.f32 %v2220, %v2607
        %v2609 = vand.u32 %v2608, 4294901760
        %2610 = vmatmul.mubr.f32.gmra.mxu0 %v2609
        %v2611 = vpop.f32.mrf.mxu0
        %v2612 = vadd.f32 %v2514, %v2611
        %v2613 = vpop.f32.mrf.mxu0
        %2614 = vdwg.mxu0
        %2615 = vmatprep.subr.mxu0 0.0
        %2616 = vmatpush1.msra.mxu0 0.0
        %2617 = vmatprep.subr.mxu0 0.0
        %2618 = vmatpush1.msra.mxu0 0.0
        %2619 = vmatprep.subr.mxu0 0.0
        %2620 = vmatpush1.msra.mxu0 0.0
        %2621 = vmatprep.subr.mxu0 0.0
        %2622 = vmatpush1.msra.mxu0 0.0
        %2623 = vmatprep.subr.mxu0 0.0
        %2624 = vmatpush1.msra.mxu0 0.0
        %2625 = vmatprep.subr.mxu0 0.0
        %2626 = vmatpush1.msra.mxu0 0.0
        %2627 = vmatprep.subr.mxu0 0.0
        %2628 = vmatpush1.msra.mxu0 0.0
        %2629 = vmatprep.subr.mxu0 0.0
        %2630 = vmatpush1.msra.mxu0 0.0
        %2631 = vmatprep.subr.mxu0 0.0
        %2632 = vmatpush1.msra.mxu0 0.0
        %2633 = vmatprep.subr.mxu0 0.0
        %2634 = vmatpush1.msra.mxu0 0.0
        %2635 = vmatprep.subr.mxu0 0.0
        %2636 = vmatpush1.msra.mxu0 0.0
        %2637 = vmatprep.subr.mxu0 0.0
        %2638 = vmatpush1.msra.mxu0 0.0
        %2639 = vmatprep.subr.mxu0 0.0
        %2640 = vmatpush1.msra.mxu0 0.0
        %2641 = vmatprep.subr.mxu0 0.0
        %2642 = vmatpush1.msra.mxu0 0.0
        %2643 = vmatprep.subr.mxu0 0.0
        %2644 = vmatpush1.msra.mxu0 0.0
        %2645 = vmatprep.subr.mxu0 0.0
        %v2646 = vand.u32 %v303, 4294901760
        %v2647 = vsub.f32 %v303, %v2646
        %v2648 = vand.u32 %v2647, 4294901760
        %2649 = vmatpush1.msra.mxu0 %v2648
        %2650 = vmatprep.subr.mxu0 0.0
        %2651 = vmatpush2.msra.mxu0 0.0
        %2652 = vmatprep.subr.mxu0 0.0
        %2653 = vmatpush2.msra.mxu0 0.0
        %2654 = vmatprep.subr.mxu0 0.0
        %2655 = vmatpush2.msra.mxu0 0.0
        %2656 = vmatprep.subr.mxu0 0.0
        %2657 = vmatpush2.msra.mxu0 0.0
        %2658 = vmatprep.subr.mxu0 0.0
        %2659 = vmatpush2.msra.mxu0 0.0
        %2660 = vmatprep.subr.mxu0 0.0
        %2661 = vmatpush2.msra.mxu0 0.0
        %2662 = vmatprep.subr.mxu0 0.0
        %2663 = vmatpush2.msra.mxu0 0.0
        %2664 = vmatprep.subr.mxu0 0.0
        %2665 = vmatpush2.msra.mxu0 0.0
        %2666 = vmatprep.subr.mxu0 0.0
        %2667 = vmatpush2.msra.mxu0 0.0
        %2668 = vmatprep.subr.mxu0 0.0
        %2669 = vmatpush2.msra.mxu0 0.0
        %2670 = vmatprep.subr.mxu0 0.0
        %2671 = vmatpush2.msra.mxu0 0.0
        %2672 = vmatprep.subr.mxu0 0.0
        %2673 = vmatpush2.msra.mxu0 0.0
        %2674 = vmatprep.subr.mxu0 0.0
        %2675 = vmatpush2.msra.mxu0 0.0
        %2676 = vmatprep.subr.mxu0 0.0
        %2677 = vmatpush2.msra.mxu0 0.0
        %2678 = vmatprep.subr.mxu0 0.0
        %2679 = vmatpush2.msra.mxu0 0.0
        %2680 = vmatprep.subr.mxu0 0.0
        %2681 = vmatpush2.msra.mxu0 0.0
        %2682 = vmatprep.mubr.f32.mxu0 0.0
        %v2683 = vand.u32 %v2211, 4294901760
        %2684 = vmatmul.mubr.f32.gmra.mxu0 %v2683
        %v2685 = vpop.f32.mrf.mxu0
        %v2686 = vadd.f32 %v2588, %v2685
        %v2687 = vpop.f32.mrf.mxu0
        %2688 = vmatprep.mubr.f32.mxu0 0.0
        %v2689 = vand.u32 %v2214, 4294901760
        %2690 = vmatmul.mubr.f32.gmra.mxu0 %v2689
        %v2691 = vpop.f32.mrf.mxu0
        %v2692 = vadd.f32 %v2596, %v2691
        %v2693 = vpop.f32.mrf.mxu0
        %2694 = vmatprep.mubr.f32.mxu0 0.0
        %v2695 = vand.u32 %v2217, 4294901760
        %2696 = vmatmul.mubr.f32.gmra.mxu0 %v2695
        %v2697 = vpop.f32.mrf.mxu0
        %v2698 = vadd.f32 %v2604, %v2697
        %v2699 = vpop.f32.mrf.mxu0
        %2700 = vmatprep.mubr.f32.mxu0 0.0
        %v2701 = vand.u32 %v2220, 4294901760
        %2702 = vmatmul.mubr.f32.gmra.mxu0 %v2701
        %v2703 = vpop.f32.mrf.mxu0
        %v2704 = vadd.f32 %v2612, %v2703
        %v2705 = vpop.f32.mrf.mxu0
        %2706 = vdwg.mxu0
        %2707 = vmatprep.subr.mxu0 0.0
        %2708 = vmatpush1.msra.mxu0 0.0
        %2709 = vmatprep.subr.mxu0 0.0
        %2710 = vmatpush1.msra.mxu0 0.0
        %2711 = vmatprep.subr.mxu0 0.0
        %2712 = vmatpush1.msra.mxu0 0.0
        %2713 = vmatprep.subr.mxu0 0.0
        %2714 = vmatpush1.msra.mxu0 0.0
        %2715 = vmatprep.subr.mxu0 0.0
        %2716 = vmatpush1.msra.mxu0 0.0
        %2717 = vmatprep.subr.mxu0 0.0
        %2718 = vmatpush1.msra.mxu0 0.0
        %2719 = vmatprep.subr.mxu0 0.0
        %2720 = vmatpush1.msra.mxu0 0.0
        %2721 = vmatprep.subr.mxu0 0.0
        %2722 = vmatpush1.msra.mxu0 0.0
        %2723 = vmatprep.subr.mxu0 0.0
        %2724 = vmatpush1.msra.mxu0 0.0
        %2725 = vmatprep.subr.mxu0 0.0
        %2726 = vmatpush1.msra.mxu0 0.0
        %2727 = vmatprep.subr.mxu0 0.0
        %2728 = vmatpush1.msra.mxu0 0.0
        %2729 = vmatprep.subr.mxu0 0.0
        %2730 = vmatpush1.msra.mxu0 0.0
        %2731 = vmatprep.subr.mxu0 0.0
        %2732 = vmatpush1.msra.mxu0 0.0
        %2733 = vmatprep.subr.mxu0 0.0
        %2734 = vmatpush1.msra.mxu0 0.0
        %2735 = vmatprep.subr.mxu0 0.0
        %2736 = vmatpush1.msra.mxu0 0.0
        %2737 = vmatprep.subr.mxu0 0.0
        %v2738 = vand.u32 %v303, 4294901760
        %2739 = vmatpush1.msra.mxu0 %v2738
        %2740 = vmatprep.subr.mxu0 0.0
        %2741 = vmatpush2.msra.mxu0 0.0
        %2742 = vmatprep.subr.mxu0 0.0
        %2743 = vmatpush2.msra.mxu0 0.0
        %2744 = vmatprep.subr.mxu0 0.0
        %2745 = vmatpush2.msra.mxu0 0.0
        %2746 = vmatprep.subr.mxu0 0.0
        %2747 = vmatpush2.msra.mxu0 0.0
        %2748 = vmatprep.subr.mxu0 0.0
        %2749 = vmatpush2.msra.mxu0 0.0
        %2750 = vmatprep.subr.mxu0 0.0
        %2751 = vmatpush2.msra.mxu0 0.0
        %2752 = vmatprep.subr.mxu0 0.0
        %2753 = vmatpush2.msra.mxu0 0.0
        %2754 = vmatprep.subr.mxu0 0.0
        %2755 = vmatpush2.msra.mxu0 0.0
        %2756 = vmatprep.subr.mxu0 0.0
        %2757 = vmatpush2.msra.mxu0 0.0
        %2758 = vmatprep.subr.mxu0 0.0
        %2759 = vmatpush2.msra.mxu0 0.0
        %2760 = vmatprep.subr.mxu0 0.0
        %2761 = vmatpush2.msra.mxu0 0.0
        %2762 = vmatprep.subr.mxu0 0.0
        %2763 = vmatpush2.msra.mxu0 0.0
        %2764 = vmatprep.subr.mxu0 0.0
        %2765 = vmatpush2.msra.mxu0 0.0
        %2766 = vmatprep.subr.mxu0 0.0
        %2767 = vmatpush2.msra.mxu0 0.0
        %2768 = vmatprep.subr.mxu0 0.0
        %2769 = vmatpush2.msra.mxu0 0.0
        %2770 = vmatprep.subr.mxu0 0.0
        %2771 = vmatpush2.msra.mxu0 0.0
        %2772 = vmatprep.mubr.f32.mxu0 0.0
        %v2773 = vand.u32 %v2211, 4294901760
        %2774 = vmatmul.mubr.f32.gmra.mxu0 %v2773
        %v2775 = vpop.f32.mrf.mxu0
        %v2776 = vadd.f32 %v2686, %v2775
        %v2777 = vpop.f32.mrf.mxu0
        %2778 = vmatprep.mubr.f32.mxu0 0.0
        %v2779 = vand.u32 %v2214, 4294901760
        %2780 = vmatmul.mubr.f32.gmra.mxu0 %v2779
        %v2781 = vpop.f32.mrf.mxu0
        %v2782 = vadd.f32 %v2692, %v2781
        %v2783 = vpop.f32.mrf.mxu0
        %2784 = vmatprep.mubr.f32.mxu0 0.0
        %v2785 = vand.u32 %v2217, 4294901760
        %2786 = vmatmul.mubr.f32.gmra.mxu0 %v2785
        %v2787 = vpop.f32.mrf.mxu0
        %v2788 = vadd.f32 %v2698, %v2787
        %v2789 = vpop.f32.mrf.mxu0
        %2790 = vmatprep.mubr.f32.mxu0 0.0
        %v2791 = vand.u32 %v2220, 4294901760
        %2792 = vmatmul.mubr.f32.gmra.mxu0 %v2791
        %v2793 = vpop.f32.mrf.mxu0
        %v2794 = vadd.f32 %v2704, %v2793
        %v2795 = vpop.f32.mrf.mxu0
        %2796 = vdwg.mxu0
        %v2797 = vmul.f32 %v304, %v2776
        %v2798 = vmul.f32 %v305, %v2782
        %v2799 = vmul.f32 %v306, %v2788
        %v2800 = vmul.f32 %v307, %v2794
        %2801 = vst [vmem:[%s271] sm:$0xff] %v2797
        %2802 = vst [vmem:[%s271 + $0x8] sm:$0xff] %v2798
        %2803 = vst [vmem:[%s271 + $0x10] sm:$0xff] %v2799
        %2804 = vst [vmem:[%s271 + $0x18] sm:$0xff] %v2800
        %s2805 = sand.u32 %s181, 1
        %s2806 = scalar_lea.sflag [#allocation3], %s2805
        %s2807 = sand.u32 %s181, 1
        %s2808 = smul.addr %s2807, 32
        %s2809 = scalar_lea.vmem [#allocation2], %s2808
        // Predicated region
        $region49: #{tpu_custom_call.1} parent=47 // pred_check
          %p2810 = pneg %p191
        $region50: #{tpu_custom_call.1} parent=47 // pred_check_branch
          %2812 = sbr.rel (%p2810) target = $region52
        $region51: #{tpu_custom_call.1} parent=47 // pred_region
          %s2814 = ssub.s32 512, 512
          %2815 = vsyncadd %s2806, %s2814
          %s2816 = smul.addr %s21, 4
          %s2817 = smul.addr %s2816, 128
          %s2818 = scalar_lea.hbm %s7, %s2817
          %s2819 = sshll.u32 %s2809, 4
          %s2820 = int_to_ptr.vmem [resolvable:$true] %s2819
          %2825 = dma.vmem_to_hbm [thread:$0]  %s2820, 512, %s2818, %s2806, 128, 128, 8
        $region52: #{tpu_custom_call.1} parent=47 // pred_fallthru
          _
      $region48: #{tpu_custom_call.1} parent=5 // pred_fallthru
        _
      %p2826 = scmp.le.s32.totalorder 2, %s16
      // Predicated region
      $region53: #{tpu_custom_call.1} parent=5 // pred_check
        %p2827 = pneg %p2826
      $region54: #{tpu_custom_call.1} parent=5 // pred_check_branch
        %2829 = sbr.rel (%p2827) target = $region56
      $region55: #{tpu_custom_call.1} parent=5 // pred_region
        %s2830 = ssub.s32 %s16, 2
        // Predicated region
        $region57: #{tpu_custom_call.1} parent=55 // pred_check
          %p2831 = pneg %p197
        $region58: #{tpu_custom_call.1} parent=55 // pred_check_branch
          %2833 = sbr.rel (%p2831) target = $region60
        $region59: #{tpu_custom_call.1} parent=55 // pred_region
          %s2834 = sand.u32 %s182, 1
          %s2835 = scalar_lea.sflag [#allocation3], %s2834
          %s2836 = sand.u32 %s182, 1
          %s2837 = smul.addr %s2836, 32
          %s2838 = scalar_lea.vmem [#allocation2], %s2837
          %2839 = dma.done %s2835, 512
        $region60: #{tpu_custom_call.1} parent=55 // pred_fallthru
          _
      $region56: #{tpu_custom_call.1} parent=5 // pred_fallthru
        _
    $region6: #{tpu_custom_call.1} parent=1 // loop_footer
      %s20 = sadd.s32 1, %s16
    $region7: #{tpu_custom_call.1} parent=1 // loop_footer_branch
      %15 = sbr.rel target = $region3
    $region8: #{tpu_custom_call.1} parent=1 // loop_exit
      _
    %2840 = vsyncpa [#allocation3], 1
    %s2841 = scalar_lea.sflag [#allocation3], 1
    %2842 = vsyncpa %s2841, 1

</llo_original>
